<compile_context>
chip_gen: v7x
topology: tpu7x:2x2x1
jax: 0.10.0
libtpu: 0.0.40
codegen_flags: <defaults>
</compile_context>

<pallas_src>
import functools

import jax
import jax.numpy as jnp
from jax.experimental import pallas as pl
from jax.experimental.pallas import tpu as pltpu


# ----------------------------------------------------------------------------
# Tiling plan.
# ----------------------------------------------------------------------------
_LANE = 128
_TM_MAX = 1024          # output-row tile cap (multiple of 8)
_TK_MAX = 1024          # reduction tile cap (multiple of 128)
# Resident (pinned) bf16 agg budget: keep well inside v7x's 64 MiB per-TC VMEM
# after adj double/triple buffers, hsum tiles, outputs and the f32 accumulator.
_RESIDENT_AGG_BYTES = 20 * 1024 * 1024


def _round_up(x, m):
    return ((x + m - 1) // m) * m


def _pad2d(x, rows, cols):
    r, c = x.shape
    return jnp.pad(x, ((0, rows - r), (0, cols - c)))


def _plan(n, d):
    """Static tiling plan, shared by adj preparation and the forward pass."""
    dp = _round_up(d, _LANE)
    t = min(_TM_MAX, _round_up(n, 256))
    tm = t
    tk = min(_TK_MAX, t)
    np_ = _round_up(n, max(tm, tk))
    # v7x megacore: keep the "parallel" row-tile count even so the two
    # TensorCores get equal work (no-op when there is a single row tile).
    if (np_ // tm) >= 2 and (np_ // tm) % 2 == 1:
        np_ += tm
    # Pin agg resident in VMEM when the (double-buffered) bf16 copy fits.
    resident = (2 * np_ * dp * 2) <= _RESIDENT_AGG_BYTES
    return tm, tk, np_, dp, resident


def _vmem_estimate(tm, tk, np_, dp, resident, n_adj_bufs):
    adj = tm * tk * 2 * n_adj_bufs
    agg = (np_ * dp * 2 * 2) if resident else (tk * dp * 2 * 2)
    hsum_in = tm * dp * 4 * 2
    agg_out = tm * dp * 2 * 2
    hsum_out = tm * dp * 4 * 2
    acc = tm * dp * 4
    return adj + agg + hsum_in + agg_out + hsum_out + acc


def prepare_adj(adj, n, d):
    """One-time (per graph) pad + bf16 cast of the normalized adjacency.

    Hoisted out of the per-step forward: rebuilding it every step is a full
    Np^2 read + 1.5*Np^2 write of pure HBM waste for a fixed graph.
    """
    _, _, np_, _, _ = _plan(n, d)
    return _pad2d(adj, np_, np_).astype(jnp.bfloat16)


# ----------------------------------------------------------------------------
# Kernel 1: one LightGCN hop, tiled MXU matmul:
#   agg_out = adj @ agg ; hsum_out = hsum + agg_out
#   adj   : (Np, Np) bf16   normalized adjacency (zero-padded)
#   agg   : (Np, Dp) bf16   previous-hop embedding (bf16 RHS stream)
#   hsum  : (Np, Dp) f32    running sum over hops (for mean pooling)
# Zero pad rows/cols/lanes are inert (contribute 0 to every dot / norm).
# ----------------------------------------------------------------------------
def _gcn_hop_kernel(tk, resident,
                    adj_ref, agg_ref, hsum_ref,
                    agg_out_ref, hsum_out_ref, acc_ref):
    k = pl.program_id(1)

    if resident:
        # Whole agg is pinned in VMEM (DMA'd once per hop); slice the k-th
        # reduction chunk out of it.
        start = pl.multiple_of(k * tk, tk)
        rhs = agg_ref[pl.ds(start, tk), :]
    else:
        rhs = agg_ref[...]

    # bf16 x bf16 MXU matmul with f32 accumulation.
    prod = jnp.dot(adj_ref[...], rhs, preferred_element_type=jnp.float32)

    @pl.when(k == 0)
    def _():
        acc_ref[...] = prod          # write-first: no zero+add VPU pass

    @pl.when(k > 0)
    def _():
        acc_ref[...] += prod

    @pl.when(k == pl.num_programs(1) - 1)
    def _():
        agg_out_ref[...] = acc_ref[...].astype(agg_out_ref.dtype)   # bf16 out
        hsum_out_ref[...] = hsum_ref[...] + acc_ref[...]            # f32 sum


def gcn_hop(adj_bf16, agg_bf16, hsum, *, tm, tk, resident):
    Np, Dp = hsum.shape
    kt = Np // tk
    grid = (Np // tm, kt)

    if kt >= 3:
        # Cleanly DMA-bound on the adj stream -> deepen its buffering.
        adj_spec = pl.BlockSpec((tm, tk), lambda i, k: (i, k),
                                pipeline_mode=pl.Buffered(3))
        n_adj_bufs = 3
    else:
        adj_spec = pl.BlockSpec((tm, tk), lambda i, k: (i, k))
        n_adj_bufs = 2

    if resident:
        # Constant block index -> DMA'd once per hop, no per-row-tile restream.
        agg_spec = pl.BlockSpec((Np, Dp), lambda i, k: (0, 0))
    else:
        agg_spec = pl.BlockSpec((tk, Dp), lambda i, k: (k, 0))

    vmem_bytes = _vmem_estimate(tm, tk, Np, Dp, resident, n_adj_bufs)
    vmem_limit = min(64 << 20, max(32 << 20, int(vmem_bytes * 1.25)))

    agg_out, hsum_out = pl.pallas_call(
        functools.partial(_gcn_hop_kernel, tk, resident),
        out_shape=(
            jax.ShapeDtypeStruct((Np, Dp), jnp.bfloat16),   # new agg (bf16)
            jax.ShapeDtypeStruct((Np, Dp), jnp.float32),    # new hop-sum
        ),
        grid_spec=pltpu.PrefetchScalarGridSpec(
            num_scalar_prefetch=0,
            grid=grid,
            in_specs=[
                adj_spec,                                       # adj tile
                agg_spec,                                       # agg (RHS)
                pl.BlockSpec((tm, Dp), lambda i, k: (i, 0)),    # hop-sum tile
            ],
            out_specs=(
                pl.BlockSpec((tm, Dp), lambda i, k: (i, 0)),    # new agg
                pl.BlockSpec((tm, Dp), lambda i, k: (i, 0)),    # new hop-sum
            ),
            scratch_shapes=[pltpu.VMEM((tm, Dp), jnp.float32)],
        ),
        compiler_params=pltpu.CompilerParams(
            dimension_semantics=("parallel", "arbitrary"),
            vmem_limit_bytes=vmem_limit),
        input_output_aliases={2: 1},   # accumulate hsum in place across hops
    )(adj_bf16, agg_bf16, hsum)
    return agg_out, hsum_out


# ----------------------------------------------------------------------------
# Kernel 2: BPR loss (create_bpr_loss, pool='mean').  Inputs are already
# gathered rows; hop means are reconstructed from the hop-sum via inv_h1.
#   u_sum/p_sum : (B, Dp)     hop-summed gcn embeddings of user / pos item
#   n_sum       : (B, K, Dp)  hop-summed gcn embeddings of neg items
#   u_ego/p_ego : (B, Dp)     hop-0 (raw) embeddings     (regularizer)
#   n_ego       : (B, K, Dp)
# ----------------------------------------------------------------------------
def _bpr_loss_kernel(decay, batch_size, inv_h1,
                     u_sum_ref, p_sum_ref, n_sum_ref,
                     u_ego_ref, p_ego_ref, n_ego_ref,
                     total_ref, mf_ref, emb_ref):
    u_e = u_sum_ref[...] * inv_h1                                # (B, D)
    pos_e = p_sum_ref[...] * inv_h1                              # (B, D)
    neg_e = n_sum_ref[...] * inv_h1                              # (B, K, D)

    pos_scores = jnp.sum(u_e * pos_e, axis=1, keepdims=True)     # (B, 1)
    neg_scores = jnp.sum(u_e[:, None, :] * neg_e, axis=-1)       # (B, K)

    diff = neg_scores - pos_scores                               # (B, K)
    # Stabilized log(1 + sum_k exp(diff_k)):   m = max(max_k diff, 0)
    m = jnp.maximum(jnp.max(diff, axis=1, keepdims=True), 0.0)   # (B, 1)
    per_ex = m + jnp.log(
        jnp.exp(-m) + jnp.sum(jnp.exp(diff - m), axis=1, keepdims=True))
    mf_loss = jnp.sum(per_ex) / batch_size

    regularize = 0.5 * (
        jnp.sum(u_ego_ref[...] ** 2)
        + jnp.sum(p_ego_ref[...] ** 2)
        + jnp.sum(n_ego_ref[...] ** 2)
    )
    emb_loss = decay * regularize / batch_size

    mf_ref[0] = mf_loss
    emb_ref[0] = emb_loss
    total_ref[0] = mf_loss + emb_loss


def bpr_loss(u_sum, p_sum, n_sum, u_ego, p_ego, n_ego, *, decay, n_hops):
    B = u_sum.shape[0]
    inv_h1 = 1.0 / float(n_hops + 1)
    total, mf, emb = pl.pallas_call(
        functools.partial(_bpr_loss_kernel, float(decay), float(B), inv_h1),
        out_shape=(
            jax.ShapeDtypeStruct((1,), jnp.float32),
            jax.ShapeDtypeStruct((1,), jnp.float32),
            jax.ShapeDtypeStruct((1,), jnp.float32),
        ),
        in_specs=[pl.BlockSpec(memory_space=pltpu.MemorySpace.VMEM)] * 6,
        out_specs=(pl.BlockSpec(memory_space=pltpu.MemorySpace.SMEM),) * 3,
    )(u_sum, p_sum, n_sum, u_ego, p_ego, n_ego)
    return total[0], mf[0], emb[0]


# ----------------------------------------------------------------------------
# LightGCN.forward (ns='rns', dropouts off).  Glue: pad / concat / per-hop
# pallas_call / row gathers.  adj_p is the pre-padded bf16 adjacency from
# prepare_adj (computed once per graph, NOT per step).
# ----------------------------------------------------------------------------
@functools.partial(jax.jit, static_argnames=("n_users", "n_hops", "K", "decay"))
def lightgcn_forward(user_embed, item_embed, adj_p, users, pos_items, neg_items,
                     *, n_users, n_hops, K, decay):
    N = user_embed.shape[0] + item_embed.shape[0]
    D = user_embed.shape[1]
    tm, tk, Np, Dp, resident = _plan(N, D)
    assert adj_p.shape == (Np, Np) and adj_p.dtype == jnp.bfloat16

    ego = jnp.concatenate([user_embed, item_embed], axis=0)        # (N, D)
    ego_p = _pad2d(ego, Np, Dp)                                    # (Np, Dp) f32
    agg = ego_p.astype(jnp.bfloat16)                               # bf16 RHS stream
    hsum = ego_p                                                   # hop-0 term (f32)
    for _ in range(n_hops):                                        # static, 2-3 hops
        agg, hsum = gcn_hop(adj_p, agg, hsum, tm=tm, tk=tk, resident=resident)

    # Row gathers (item rows live at offset n_users in the concat).
    u_idx = users
    p_idx = n_users + pos_items
    n_idx = n_users + neg_items[:, :K]                             # (B, K)  ns='rns'

    u_sum = jnp.take(hsum, u_idx, axis=0)                          # (B, Dp)
    p_sum = jnp.take(hsum, p_idx, axis=0)                          # (B, Dp)
    n_sum = jnp.take(hsum, n_idx, axis=0)                          # (B, K, Dp)
    u_ego = jnp.take(ego_p, u_idx, axis=0)                         # (B, Dp)  hop-0
    p_ego = jnp.take(ego_p, p_idx, axis=0)
    n_ego = jnp.take(ego_p, n_idx, axis=0)

    return bpr_loss(u_sum, p_sum, n_sum, u_ego, p_ego, n_ego,
                    decay=decay, n_hops=n_hops)


# ----------------------------------------------------------------------------
# Deterministic parameter / input construction.
# ----------------------------------------------------------------------------
def xavier_uniform(key, shape):
    fan_out, fan_in = shape  # torch: fan_in = size(1), fan_out = size(0)
    bound = (6.0 / (fan_in + fan_out)) ** 0.5
    return jax.random.uniform(key, shape, jnp.float32, -bound, bound)


def l2_normalize_rows(x, eps=1e-12):
    norm = jnp.sqrt(jnp.sum(x * x, axis=1, keepdims=True))
    return x / jnp.maximum(norm, eps)


def build_norm_adj(key, n_users, n_items):
    # Dense stand-in for the sparse normalized bipartite adjacency.
    N = n_users + n_items
    R = (jax.random.uniform(key, (n_users, n_items)) < 0.3).astype(jnp.float32)
    A = jnp.zeros((N, N), jnp.float32)
    A = A.at[:n_users, n_users:].set(R)
    A = A.at[n_users:, :n_users].set(R.T)
    deg = jnp.sum(A, axis=1)
    d_inv_sqrt = jnp.where(deg > 0, 1.0 / jnp.sqrt(jnp.maximum(deg, 1e-12)), 0.0)
    return d_inv_sqrt[:, None] * A * d_inv_sqrt[None, :]


if __name__ == "__main__":
    # Small config consistent with LightGCN.__init__
    n_users, n_items, dim = 16, 32, 32
    n_hops, K, batch = 2, 1, 4
    decay = 1e-4

    key = jax.random.PRNGKey(0)
    k_u, k_i, k_adj = jax.random.split(key, 3)

    # xavier init + row L2-normalize (as in _init_weight, sans file load)
    user_embed = l2_normalize_rows(xavier_uniform(k_u, (n_users, dim)))
    item_embed = l2_normalize_rows(xavier_uniform(k_i, (n_items, dim)))
    adj = build_norm_adj(k_adj, n_users, n_items)

    # One-time adjacency prep (hoisted out of the per-step forward).
    adj_p = prepare_adj(adj, n_users + n_items, dim)
    adj_p = jax.block_until_ready(adj_p)

    users = jnp.array([0, 1, 2, 3], dtype=jnp.int32)
    pos_items = jnp.array([1, 3, 5, 7], dtype=jnp.int32)
    neg_items = jnp.array([[2], [4], [6], [8]], dtype=jnp.int32)  # (B, K*n_negs)

    total, mf, emb = lightgcn_forward(
        user_embed, item_embed, adj_p, users, pos_items, neg_items,
        n_users=n_users, n_hops=n_hops, K=K, decay=decay,
    )
    jax.block_until_ready((total, mf, emb))
    print("KERNEL_OK")
</pallas_src>

<mosaic_0001>
module attributes {stable_mosaic.version = 11 : i64} {
  func.func @_bpr_loss_kernel(%arg0: memref<4x128xf32, #tpu.memory_space<vmem>>, %arg1: memref<4x128xf32, #tpu.memory_space<vmem>>, %arg2: memref<4x1x128xf32, #tpu.memory_space<vmem>>, %arg3: memref<4x128xf32, #tpu.memory_space<vmem>>, %arg4: memref<4x128xf32, #tpu.memory_space<vmem>>, %arg5: memref<4x1x128xf32, #tpu.memory_space<vmem>>, %arg6: memref<1xf32, #tpu.memory_space<smem>>, %arg7: memref<1xf32, #tpu.memory_space<smem>>, %arg8: memref<1xf32, #tpu.memory_space<smem>>) attributes {dimension_semantics = [], scalar_prefetch = 0 : i64, scratch_operands = 0 : i64, tpu.core_type = #tpu.core_type<tc>} {
    %c0 = arith.constant 0 : index
    %c0_0 = arith.constant 0 : index
    %0 = vector.load %arg0[%c0, %c0_0] : memref<4x128xf32, #tpu.memory_space<vmem>>, vector<4x128xf32>
    %cst = arith.constant 0.333333343 : f32
    %1 = vector.broadcast %cst : f32 to vector<4x128xf32>
    %2 = arith.mulf %0, %1 : vector<4x128xf32>
    %c0_1 = arith.constant 0 : index
    %c0_2 = arith.constant 0 : index
    %3 = vector.load %arg1[%c0_1, %c0_2] : memref<4x128xf32, #tpu.memory_space<vmem>>, vector<4x128xf32>
    %cst_3 = arith.constant 0.333333343 : f32
    %4 = vector.broadcast %cst_3 : f32 to vector<4x128xf32>
    %5 = arith.mulf %3, %4 : vector<4x128xf32>
    %c0_4 = arith.constant 0 : index
    %c0_5 = arith.constant 0 : index
    %c0_6 = arith.constant 0 : index
    %6 = vector.load %arg2[%c0_4, %c0_5, %c0_6] : memref<4x1x128xf32, #tpu.memory_space<vmem>>, vector<4x1x128xf32>
    %cst_7 = arith.constant 0.333333343 : f32
    %7 = vector.broadcast %cst_7 : f32 to vector<4x1x128xf32>
    %8 = arith.mulf %6, %7 : vector<4x1x128xf32>
    %9 = arith.mulf %2, %5 : vector<4x128xf32>
    %cst_8 = arith.constant dense<0.000000e+00> : vector<4xf32>
    %10 = vector.multi_reduction <add>, %9, %cst_8 [1] : vector<4x128xf32> to vector<4xf32>
    %11 = vector.shape_cast %10 : vector<4xf32> to vector<4x1xf32>
    %12 = vector.shape_cast %2 : vector<4x128xf32> to vector<4x1x128xf32>
    %13 = arith.mulf %12, %8 : vector<4x1x128xf32>
    %cst_9 = arith.constant dense<0.000000e+00> : vector<4x1xf32>
    %14 = vector.multi_reduction <add>, %13, %cst_9 [2] : vector<4x1x128xf32> to vector<4x1xf32>
    %15 = arith.subf %14, %11 : vector<4x1xf32>
    %cst_10 = arith.constant dense<0xFF800000> : vector<4xf32>
    %16 = vector.multi_reduction <maximumf>, %15, %cst_10 [1] : vector<4x1xf32> to vector<4xf32>
    %17 = vector.shape_cast %16 : vector<4xf32> to vector<4x1xf32>
    %cst_11 = arith.constant 0.000000e+00 : f32
    %18 = vector.broadcast %cst_11 : f32 to vector<4x1xf32>
    %19 = arith.maximumf %17, %18 : vector<4x1xf32>
    %cst_12 = arith.constant 0.000000e+00 : f32
    %20 = vector.broadcast %cst_12 : f32 to vector<4x1xf32>
    %21 = arith.subf %20, %19 : vector<4x1xf32>
    %22 = math.exp %21 : vector<4x1xf32>
    %23 = arith.subf %15, %19 : vector<4x1xf32>
    %24 = math.exp %23 : vector<4x1xf32>
    %cst_13 = arith.constant dense<0.000000e+00> : vector<4xf32>
    %25 = vector.multi_reduction <add>, %24, %cst_13 [1] : vector<4x1xf32> to vector<4xf32>
    %26 = vector.shape_cast %25 : vector<4xf32> to vector<4x1xf32>
    %27 = arith.addf %22, %26 : vector<4x1xf32>
    %28 = math.log %27 : vector<4x1xf32>
    %29 = arith.addf %19, %28 : vector<4x1xf32>
    %30 = vector.shape_cast %29 : vector<4x1xf32> to vector<1x4x1xf32>
    %cst_14 = arith.constant dense<0.000000e+00> : vector<1xf32>
    %31 = vector.multi_reduction <add>, %30, %cst_14 [1, 2] : vector<1x4x1xf32> to vector<1xf32>
    %32 = vector.shape_cast %31 : vector<1xf32> to vector<1x1x1xf32>
    %33 = vector.extract %32[0, 0, 0] : f32 from vector<1x1x1xf32>
    %cst_15 = arith.constant 4.000000e+00 : f32
    %34 = arith.divf %33, %cst_15 : f32
    %c0_16 = arith.constant 0 : index
    %c0_17 = arith.constant 0 : index
    %35 = vector.load %arg3[%c0_16, %c0_17] : memref<4x128xf32, #tpu.memory_space<vmem>>, vector<4x128xf32>
    %36 = arith.mulf %35, %35 : vector<4x128xf32>
    %37 = vector.shape_cast %36 : vector<4x128xf32> to vector<1x4x128xf32>
    %cst_18 = arith.constant dense<0.000000e+00> : vector<1xf32>
    %38 = vector.multi_reduction <add>, %37, %cst_18 [1, 2] : vector<1x4x128xf32> to vector<1xf32>
    %39 = vector.shape_cast %38 : vector<1xf32> to vector<1x1x1xf32>
    %40 = vector.extract %39[0, 0, 0] : f32 from vector<1x1x1xf32>
    %c0_19 = arith.constant 0 : index
    %c0_20 = arith.constant 0 : index
    %41 = vector.load %arg4[%c0_19, %c0_20] : memref<4x128xf32, #tpu.memory_space<vmem>>, vector<4x128xf32>
    %42 = arith.mulf %41, %41 : vector<4x128xf32>
    %43 = vector.shape_cast %42 : vector<4x128xf32> to vector<1x4x128xf32>
    %cst_21 = arith.constant dense<0.000000e+00> : vector<1xf32>
    %44 = vector.multi_reduction <add>, %43, %cst_21 [1, 2] : vector<1x4x128xf32> to vector<1xf32>
    %45 = vector.shape_cast %44 : vector<1xf32> to vector<1x1x1xf32>
    %46 = vector.extract %45[0, 0, 0] : f32 from vector<1x1x1xf32>
    %47 = arith.addf %40, %46 : f32
    %c0_22 = arith.constant 0 : index
    %c0_23 = arith.constant 0 : index
    %c0_24 = arith.constant 0 : index
    %48 = vector.load %arg5[%c0_22, %c0_23, %c0_24] : memref<4x1x128xf32, #tpu.memory_space<vmem>>, vector<4x1x128xf32>
    %49 = arith.mulf %48, %48 : vector<4x1x128xf32>
    %50 = vector.shape_cast %49 : vector<4x1x128xf32> to vector<1x4x1x128xf32>
    %cst_25 = arith.constant dense<0.000000e+00> : vector<1xf32>
    %51 = vector.multi_reduction <add>, %50, %cst_25 [1, 2, 3] : vector<1x4x1x128xf32> to vector<1xf32>
    %52 = vector.shape_cast %51 : vector<1xf32> to vector<1x1x1x1xf32>
    %53 = vector.extract %52[0, 0, 0, 0] : f32 from vector<1x1x1x1xf32>
    %54 = arith.addf %47, %53 : f32
    %cst_26 = arith.constant 5.000000e-01 : f32
    %55 = arith.mulf %cst_26, %54 : f32
    %cst_27 = arith.constant 9.99999974E-5 : f32
    %56 = arith.mulf %cst_27, %55 : f32
    %cst_28 = arith.constant 4.000000e+00 : f32
    %57 = arith.divf %56, %cst_28 : f32
    %c0_29 = arith.constant 0 : index
    %58 = memref.load %arg7[%c0_29] : memref<1xf32, #tpu.memory_space<smem>>
    memref.store %34, %arg7[%c0_29] : memref<1xf32, #tpu.memory_space<smem>>
    %c0_30 = arith.constant 0 : index
    %59 = memref.load %arg8[%c0_30] : memref<1xf32, #tpu.memory_space<smem>>
    memref.store %57, %arg8[%c0_30] : memref<1xf32, #tpu.memory_space<smem>>
    %60 = arith.addf %34, %57 : f32
    %c0_31 = arith.constant 0 : index
    %61 = memref.load %arg6[%c0_31] : memref<1xf32, #tpu.memory_space<smem>>
    memref.store %60, %arg6[%c0_31] : memref<1xf32, #tpu.memory_space<smem>>
    return
  }
}

module attributes {stable_mosaic.version = 11 : i64} {
  func.func @_gcn_hop_kernel(%arg0: i32, %arg1: i32, %arg2: memref<256x256xbf16, #tpu.memory_space<vmem>>, %arg3: memref<256x128xbf16, #tpu.memory_space<vmem>>, %arg4: memref<256x128xf32, #tpu.memory_space<vmem>>, %arg5: memref<256x128xbf16, #tpu.memory_space<vmem>>, %arg6: memref<256x128xf32, #tpu.memory_space<vmem>>, %arg7: memref<256x128xf32, #tpu.memory_space<vmem>>) attributes {dimension_semantics = [#tpu.dimension_semantics<parallel>, #tpu.dimension_semantics<arbitrary>], iteration_bounds = array<i64: 1, 1>, scalar_prefetch = 0 : i64, scratch_operands = 1 : i64, tpu.core_type = #tpu.core_type<tc>, window_params = [{transform_indices = @transform_0, window_bounds = array<i64: 256, 256>}, {pipeline_mode = #tpu.pipeline_mode<synchronous>, transform_indices = @transform_1, window_bounds = array<i64: 256, 128>}, {transform_indices = @transform_2, window_bounds = array<i64: 256, 128>}, {transform_indices = @transform_3, window_bounds = array<i64: 256, 128>}, {transform_indices = @transform_4, window_bounds = array<i64: 256, 128>}]} {
    %c256_i32 = arith.constant 256 : i32
    %0 = arith.muli %arg1, %c256_i32 : i32
    %1 = tpu.assume_multiple %0, 256 : i32
    %2 = arith.index_cast %1 : i32 to index
    %c0 = arith.constant 0 : index
    %3 = vector.load %arg3[%2, %c0] : memref<256x128xbf16, #tpu.memory_space<vmem>>, vector<256x128xbf16>
    %c0_0 = arith.constant 0 : index
    %c0_1 = arith.constant 0 : index
    %4 = vector.load %arg2[%c0_0, %c0_1] : memref<256x256xbf16, #tpu.memory_space<vmem>>, vector<256x256xbf16>
    %cst = arith.constant dense<0.000000e+00> : vector<256x128xf32>
    %5 = tpu.matmul %4, %3, %cst {dimension_numbers = #tpu.dot_dimension_numbers<[1], [0], [0], [1], [0, 0, 1, 1], [], []>} : vector<256x256xbf16>, vector<256x128xbf16>, vector<256x128xf32> -> vector<256x128xf32>
    %c0_i32 = arith.constant 0 : i32
    %6 = arith.cmpi eq, %arg1, %c0_i32 : i32
    %7 = arith.extui %6 : i1 to i32
    %c0_i32_2 = arith.constant 0 : i32
    %8 = arith.cmpi ne, %7, %c0_i32_2 : i32
    scf.if %8 {
      %c0_7 = arith.constant 0 : index
      %c0_8 = arith.constant 0 : index
      %15 = vector.load %arg7[%c0_7, %c0_8] : memref<256x128xf32, #tpu.memory_space<vmem>>, vector<256x128xf32>
      tpu.vector_store %arg7[%c0_7, %c0_8], %5 {strides = array<i32>} : memref<256x128xf32, #tpu.memory_space<vmem>>, vector<256x128xf32>,
    } else {
    }
    %c0_i32_3 = arith.constant 0 : i32
    %9 = arith.cmpi sgt, %arg1, %c0_i32_3 : i32
    %10 = arith.extui %9 : i1 to i32
    %c0_i32_4 = arith.constant 0 : i32
    %11 = arith.cmpi ne, %10, %c0_i32_4 : i32
    scf.if %11 {
      %c0_7 = arith.constant 0 : index
      %c0_8 = arith.constant 0 : index
      %15 = vector.load %arg7[%c0_7, %c0_8] : memref<256x128xf32, #tpu.memory_space<vmem>>, vector<256x128xf32>
      %16 = arith.addf %15, %5 : vector<256x128xf32>
      %c0_9 = arith.constant 0 : index
      %c0_10 = arith.constant 0 : index
      %17 = vector.load %arg7[%c0_9, %c0_10] : memref<256x128xf32, #tpu.memory_space<vmem>>, vector<256x128xf32>
      tpu.vector_store %arg7[%c0_9, %c0_10], %16 {strides = array<i32>} : memref<256x128xf32, #tpu.memory_space<vmem>>, vector<256x128xf32>,
    } else {
    }
    %c0_i32_5 = arith.constant 0 : i32
    %12 = arith.cmpi eq, %arg1, %c0_i32_5 : i32
    %13 = arith.extui %12 : i1 to i32
    %c0_i32_6 = arith.constant 0 : i32
    %14 = arith.cmpi ne, %13, %c0_i32_6 : i32
    scf.if %14 {
      %c0_7 = arith.constant 0 : index
      %c0_8 = arith.constant 0 : index
      %15 = vector.load %arg7[%c0_7, %c0_8] : memref<256x128xf32, #tpu.memory_space<vmem>>, vector<256x128xf32>
      %16 = arith.truncf %15 : vector<256x128xf32> to vector<256x128xbf16>
      %c0_9 = arith.constant 0 : index
      %c0_10 = arith.constant 0 : index
      %17 = vector.load %arg5[%c0_9, %c0_10] : memref<256x128xbf16, #tpu.memory_space<vmem>>, vector<256x128xbf16>
      tpu.vector_store %arg5[%c0_9, %c0_10], %16 {strides = array<i32>} : memref<256x128xbf16, #tpu.memory_space<vmem>>, vector<256x128xbf16>,
      %c0_11 = arith.constant 0 : index
      %c0_12 = arith.constant 0 : index
      %18 = vector.load %arg4[%c0_11, %c0_12] : memref<256x128xf32, #tpu.memory_space<vmem>>, vector<256x128xf32>
      %c0_13 = arith.constant 0 : index
      %c0_14 = arith.constant 0 : index
      %19 = vector.load %arg7[%c0_13, %c0_14] : memref<256x128xf32, #tpu.memory_space<vmem>>, vector<256x128xf32>
      %20 = arith.addf %18, %19 : vector<256x128xf32>
      %c0_15 = arith.constant 0 : index
      %c0_16 = arith.constant 0 : index
      %21 = vector.load %arg6[%c0_15, %c0_16] : memref<256x128xf32, #tpu.memory_space<vmem>>, vector<256x128xf32>
      tpu.vector_store %arg6[%c0_15, %c0_16], %20 {strides = array<i32>} : memref<256x128xf32, #tpu.memory_space<vmem>>, vector<256x128xf32>,
    } else {
    }
    return
  }
  func.func @transform_0(%arg0: i32, %arg1: i32) -> (i32, i32) {
    %c0_i32 = arith.constant 0 : i32
    return %arg0, %arg1 : i32, i32
  }
  func.func @transform_1(%arg0: i32, %arg1: i32) -> (i32, i32) {
    %c0_i32 = arith.constant 0 : i32
    %c0_i32_0 = arith.constant 0 : i32
    %c0_i32_1 = arith.constant 0 : i32
    return %c0_i32, %c0_i32_0 : i32, i32
  }
  func.func @transform_2(%arg0: i32, %arg1: i32) -> (i32, i32) {
    %c0_i32 = arith.constant 0 : i32
    %c0_i32_0 = arith.constant 0 : i32
    return %arg0, %c0_i32 : i32, i32
  }
  func.func @transform_3(%arg0: i32, %arg1: i32) -> (i32, i32) {
    %c0_i32 = arith.constant 0 : i32
    %c0_i32_0 = arith.constant 0 : i32
    return %arg0, %c0_i32 : i32, i32
  }
  func.func @transform_4(%arg0: i32, %arg1: i32) -> (i32, i32) {
    %c0_i32 = arith.constant 0 : i32
    %c0_i32_0 = arith.constant 0 : i32
    return %arg0, %c0_i32 : i32, i32
  }
}

module attributes {stable_mosaic.version = 11 : i64} {
  func.func @_gcn_hop_kernel(%arg0: i32, %arg1: i32, %arg2: memref<256x256xbf16, #tpu.memory_space<vmem>>, %arg3: memref<256x128xbf16, #tpu.memory_space<vmem>>, %arg4: memref<256x128xf32, #tpu.memory_space<vmem>>, %arg5: memref<256x128xbf16, #tpu.memory_space<vmem>>, %arg6: memref<256x128xf32, #tpu.memory_space<vmem>>, %arg7: memref<256x128xf32, #tpu.memory_space<vmem>>) attributes {dimension_semantics = [#tpu.dimension_semantics<parallel>, #tpu.dimension_semantics<arbitrary>], iteration_bounds = array<i64: 1, 1>, scalar_prefetch = 0 : i64, scratch_operands = 1 : i64, tpu.core_type = #tpu.core_type<tc>, window_params = [{transform_indices = @transform_0, window_bounds = array<i64: 256, 256>}, {pipeline_mode = #tpu.pipeline_mode<synchronous>, transform_indices = @transform_1, window_bounds = array<i64: 256, 128>}, {transform_indices = @transform_2, window_bounds = array<i64: 256, 128>}, {transform_indices = @transform_3, window_bounds = array<i64: 256, 128>}, {transform_indices = @transform_4, window_bounds = array<i64: 256, 128>}]} {
    %c256_i32 = arith.constant 256 : i32
    %0 = arith.muli %arg1, %c256_i32 : i32
    %1 = tpu.assume_multiple %0, 256 : i32
    %2 = arith.index_cast %1 : i32 to index
    %c0 = arith.constant 0 : index
    %3 = vector.load %arg3[%2, %c0] : memref<256x128xbf16, #tpu.memory_space<vmem>>, vector<256x128xbf16>
    %c0_0 = arith.constant 0 : index
    %c0_1 = arith.constant 0 : index
    %4 = vector.load %arg2[%c0_0, %c0_1] : memref<256x256xbf16, #tpu.memory_space<vmem>>, vector<256x256xbf16>
    %cst = arith.constant dense<0.000000e+00> : vector<256x128xf32>
    %5 = tpu.matmul %4, %3, %cst {dimension_numbers = #tpu.dot_dimension_numbers<[1], [0], [0], [1], [0, 0, 1, 1], [], []>} : vector<256x256xbf16>, vector<256x128xbf16>, vector<256x128xf32> -> vector<256x128xf32>
    %c0_i32 = arith.constant 0 : i32
    %6 = arith.cmpi eq, %arg1, %c0_i32 : i32
    %7 = arith.extui %6 : i1 to i32
    %c0_i32_2 = arith.constant 0 : i32
    %8 = arith.cmpi ne, %7, %c0_i32_2 : i32
    scf.if %8 {
      %c0_7 = arith.constant 0 : index
      %c0_8 = arith.constant 0 : index
      %15 = vector.load %arg7[%c0_7, %c0_8] : memref<256x128xf32, #tpu.memory_space<vmem>>, vector<256x128xf32>
      tpu.vector_store %arg7[%c0_7, %c0_8], %5 {strides = array<i32>} : memref<256x128xf32, #tpu.memory_space<vmem>>, vector<256x128xf32>,
    } else {
    }
    %c0_i32_3 = arith.constant 0 : i32
    %9 = arith.cmpi sgt, %arg1, %c0_i32_3 : i32
    %10 = arith.extui %9 : i1 to i32
    %c0_i32_4 = arith.constant 0 : i32
    %11 = arith.cmpi ne, %10, %c0_i32_4 : i32
    scf.if %11 {
      %c0_7 = arith.constant 0 : index
      %c0_8 = arith.constant 0 : index
      %15 = vector.load %arg7[%c0_7, %c0_8] : memref<256x128xf32, #tpu.memory_space<vmem>>, vector<256x128xf32>
      %16 = arith.addf %15, %5 : vector<256x128xf32>
      %c0_9 = arith.constant 0 : index
      %c0_10 = arith.constant 0 : index
      %17 = vector.load %arg7[%c0_9, %c0_10] : memref<256x128xf32, #tpu.memory_space<vmem>>, vector<256x128xf32>
      tpu.vector_store %arg7[%c0_9, %c0_10], %16 {strides = array<i32>} : memref<256x128xf32, #tpu.memory_space<vmem>>, vector<256x128xf32>,
    } else {
    }
    %c0_i32_5 = arith.constant 0 : i32
    %12 = arith.cmpi eq, %arg1, %c0_i32_5 : i32
    %13 = arith.extui %12 : i1 to i32
    %c0_i32_6 = arith.constant 0 : i32
    %14 = arith.cmpi ne, %13, %c0_i32_6 : i32
    scf.if %14 {
      %c0_7 = arith.constant 0 : index
      %c0_8 = arith.constant 0 : index
      %15 = vector.load %arg7[%c0_7, %c0_8] : memref<256x128xf32, #tpu.memory_space<vmem>>, vector<256x128xf32>
      %16 = arith.truncf %15 : vector<256x128xf32> to vector<256x128xbf16>
      %c0_9 = arith.constant 0 : index
      %c0_10 = arith.constant 0 : index
      %17 = vector.load %arg5[%c0_9, %c0_10] : memref<256x128xbf16, #tpu.memory_space<vmem>>, vector<256x128xbf16>
      tpu.vector_store %arg5[%c0_9, %c0_10], %16 {strides = array<i32>} : memref<256x128xbf16, #tpu.memory_space<vmem>>, vector<256x128xbf16>,
      %c0_11 = arith.constant 0 : index
      %c0_12 = arith.constant 0 : index
      %18 = vector.load %arg4[%c0_11, %c0_12] : memref<256x128xf32, #tpu.memory_space<vmem>>, vector<256x128xf32>
      %c0_13 = arith.constant 0 : index
      %c0_14 = arith.constant 0 : index
      %19 = vector.load %arg7[%c0_13, %c0_14] : memref<256x128xf32, #tpu.memory_space<vmem>>, vector<256x128xf32>
      %20 = arith.addf %18, %19 : vector<256x128xf32>
      %c0_15 = arith.constant 0 : index
      %c0_16 = arith.constant 0 : index
      %21 = vector.load %arg6[%c0_15, %c0_16] : memref<256x128xf32, #tpu.memory_space<vmem>>, vector<256x128xf32>
      tpu.vector_store %arg6[%c0_15, %c0_16], %20 {strides = array<i32>} : memref<256x128xf32, #tpu.memory_space<vmem>>, vector<256x128xf32>,
    } else {
    }
    return
  }
  func.func @transform_0(%arg0: i32, %arg1: i32) -> (i32, i32) {
    %c0_i32 = arith.constant 0 : i32
    return %arg0, %arg1 : i32, i32
  }
  func.func @transform_1(%arg0: i32, %arg1: i32) -> (i32, i32) {
    %c0_i32 = arith.constant 0 : i32
    %c0_i32_0 = arith.constant 0 : i32
    %c0_i32_1 = arith.constant 0 : i32
    return %c0_i32, %c0_i32_0 : i32, i32
  }
  func.func @transform_2(%arg0: i32, %arg1: i32) -> (i32, i32) {
    %c0_i32 = arith.constant 0 : i32
    %c0_i32_0 = arith.constant 0 : i32
    return %arg0, %c0_i32 : i32, i32
  }
  func.func @transform_3(%arg0: i32, %arg1: i32) -> (i32, i32) {
    %c0_i32 = arith.constant 0 : i32
    %c0_i32_0 = arith.constant 0 : i32
    return %arg0, %c0_i32 : i32, i32
  }
  func.func @transform_4(%arg0: i32, %arg1: i32) -> (i32, i32) {
    %c0_i32 = arith.constant 0 : i32
    %c0_i32_0 = arith.constant 0 : i32
    return %arg0, %c0_i32 : i32, i32
  }
}

</mosaic_0001>

<llo_original>
// kernel: lightgcn_forward.5
$region0: #{lightgcn_forward.5}
  #allocation0 [shape = 'u32[]', space=smem, size = 0x4, offset = 0x4, fixed_abs, tag = 'smem constant byte address 0x4 - core index']
  #allocation1 [shape = 'u32[144,128]{1,0:T(1,128)}', space=vmem, size = 0x12000, scoped, tag = 'internal scratch']
  %s0 = inlined_call_operand.vmem [shape: f32[4,128], index: 0, kind: input, shape index: {}]
  %s1 = inlined_call_operand.vmem [shape: f32[4,128], index: 1, kind: input, shape index: {}]
  %s2 = inlined_call_operand.vmem [shape: f32[4,1,128], index: 2, kind: input, shape index: {}]
  %s3 = inlined_call_operand.vmem [shape: f32[4,128], index: 3, kind: input, shape index: {}]
  %s4 = inlined_call_operand.vmem [shape: f32[4,128], index: 4, kind: input, shape index: {}]
  %s5 = inlined_call_operand.vmem [shape: f32[4,1,128], index: 5, kind: input, shape index: {}]
  %s6 = inlined_call_operand.hbm [shape: f32[1], index: 6, kind: output, shape index: {0}]
  %s7 = inlined_call_operand.hbm [shape: f32[1], index: 7, kind: output, shape index: {1}]
  %s8 = inlined_call_operand.hbm [shape: f32[1], index: 8, kind: output, shape index: {2}]
  %9 = xla_tuple %s6, %s7, %s8
  %s10 = sld [smem:[#allocation0]]
  $region50: #{lightgcn_forward.5} parent=0
    _
  %s12 = ssub.s32 1, %s10
  %s13 = scalar_select 0, %s12, %s10
  $region1: #{lightgcn_forward.5} parent=0
    #allocation2 [shape = 'u8[512]{0}', space=smem, size = 0x200, scoped, tag = 'output window, operand 0, single buffered']
    #allocation3 [shape = 's32[1]{0}', space=sflag, size = 0x4, scoped, tag = 'scoped memory for lightgcn_forward.5']
    #allocation4 [shape = 'u8[512]{0}', space=smem, size = 0x200, scoped, tag = 'output window, operand 1, single buffered']
    #allocation5 [shape = 's32[1]{0}', space=sflag, size = 0x4, scoped, tag = 'scoped memory for lightgcn_forward.5']
    #allocation6 [shape = 'u8[512]{0}', space=smem, size = 0x200, scoped, tag = 'output window, operand 2, single buffered']
    %14 = vsyncpa [#allocation3], 0
    %15 = vsyncpa [#allocation5], 0
    // Predicated region
    $region2: #{lightgcn_forward.5} parent=1 // pred_check
      _
    $region3: #{lightgcn_forward.5} parent=1 // pred_check_branch
      %17 = sbr.rel (0) target = $region5
    $region4: #{lightgcn_forward.5} parent=1 // pred_region
      _
    $region5: #{lightgcn_forward.5} parent=1 // pred_fallthru
      _
    // Predicated region
    $region6: #{lightgcn_forward.5} parent=1 // pred_check
      _
    $region7: #{lightgcn_forward.5} parent=1 // pred_check_branch
      %19 = sbr.rel (0) target = $region9
    $region8: #{lightgcn_forward.5} parent=1 // pred_region
      _
    $region9: #{lightgcn_forward.5} parent=1 // pred_fallthru
      _
    // Predicated region
    $region10: #{lightgcn_forward.5} parent=1 // pred_check
      _
    $region11: #{lightgcn_forward.5} parent=1 // pred_check_branch
      %21 = sbr.rel (0) target = $region13
    $region12: #{lightgcn_forward.5} parent=1 // pred_region
      _
    $region13: #{lightgcn_forward.5} parent=1 // pred_fallthru
      _
    // Predicated region
    $region14: #{lightgcn_forward.5} parent=1 // pred_check
      _
    $region15: #{lightgcn_forward.5} parent=1 // pred_check_branch
      %23 = sbr.rel (0) target = $region17
    $region16: #{lightgcn_forward.5} parent=1 // pred_region
      _
    $region17: #{lightgcn_forward.5} parent=1 // pred_fallthru
      _
    // Predicated region
    $region18: #{lightgcn_forward.5} parent=1 // pred_check
      _
    $region19: #{lightgcn_forward.5} parent=1 // pred_check_branch
      %25 = sbr.rel (0) target = $region21
    $region20: #{lightgcn_forward.5} parent=1 // pred_region
      _
    $region21: #{lightgcn_forward.5} parent=1 // pred_fallthru
      _
    // Predicated region
    $region22: #{lightgcn_forward.5} parent=1 // pred_check
      _
    $region23: #{lightgcn_forward.5} parent=1 // pred_check_branch
      %27 = sbr.rel (0) target = $region25
    $region24: #{lightgcn_forward.5} parent=1 // pred_region
      _
    $region25: #{lightgcn_forward.5} parent=1 // pred_fallthru
      _
    %v28 = vld [vmem:[%s0] sm:$0xf]
    %v29 = vmul.f32 %v28, 0.33333334
    %v30 = vld [vmem:[%s1] sm:$0xf]
    %v31 = vmul.f32 %v30, 0.33333334
    %v32 = vld [vmem:[%s2] sm:$0x1]
    %v33 = vld [vmem:[%s2 + $0x1] sm:$0x1]
    %v34 = vld [vmem:[%s2 + $0x2] sm:$0x1]
    %v35 = vld [vmem:[%s2 + $0x3] sm:$0x1]
    %v36 = vmul.f32 %v32, 0.33333334
    %v37 = vmul.f32 %v33, 0.33333334
    %v38 = vmul.f32 %v34, 0.33333334
    %v39 = vmul.f32 %v35, 0.33333334
    %v40 = vmul.f32 %v29, %v31
    %vm41 = vcmask 1043456
    %v42 = vsel %vm41, %v40, 0.0
    %43 = vadd.xlane.f32.xlu0 %v42
    %v44 = vpop.xlane.xlu0 %43
    %v47 = vunpack.c.l.s4 1966171168
    %v48 = vunpack.c.0.s8 %v47
    %v49 = vlaneseq
    %v50 = vshrl.u32 %v49, 7
    %v51 = vsub.s32 %v48, %v50
    %v52 = vrot.slane %v29, %v51
    %v53 = vcombine.high %v52, %v52
    %v55 = vunpack.c.l.s4 1966171168
    %v56 = vunpack.c.0.s8 %v55
    %v57 = vlaneseq
    %v58 = vshrl.u32 %v57, 7
    %v59 = vsub.s32 %v56, %v58
    %v60 = vrot.slane %v52, %v59
    %v62 = vunpack.c.l.s4 1966171168
    %v63 = vunpack.c.0.s8 %v62
    %v64 = vlaneseq
    %v65 = vshrl.u32 %v64, 7
    %v66 = vsub.s32 %v63, %v65
    %v67 = vrot.slane %v53, %v66
    %v68 = vcombine.high %v60, %v60
    %v69 = vcombine.high %v67, %v67
    %v74 = vmul.f32 %v60, %v36
    %v75 = vmul.f32 %v67, %v37
    %v76 = vmul.f32 %v68, %v38
    %v77 = vmul.f32 %v69, %v39
    %vm78 = vcmask 1040384
    %v79 = vsel %vm78, %v74, 0.0
    %80 = vadd.xlane.f32.xlu0 %v79
    %v81 = vpop.xlane.xlu0 %80
    %v82 = vsel %vm78, %v75, 0.0
    %83 = vadd.xlane.f32.xlu0 %v82
    %v84 = vpop.xlane.xlu0 %83
    %v85 = vsel %vm78, %v76, 0.0
    %86 = vadd.xlane.f32.xlu0 %v85
    %v87 = vpop.xlane.xlu0 %86
    %v88 = vsel %vm78, %v77, 0.0
    %89 = vadd.xlane.f32.xlu0 %v88
    %v90 = vpop.xlane.xlu0 %89
    %v92 = vlaneseq
    %v93 = vshrl.u32 %v92, 7
    %v94 = vsub.s32 0, %v93
    %v95 = vrot.slane %v44, %v94
    %v96 = vlaneseq
    %v97 = vshrl.u32 %v96, 7
    %v98 = vsub.s32 1, %v97
    %v99 = vrot.slane %v44, %v98
    %v100 = vlaneseq
    %v101 = vshrl.u32 %v100, 7
    %v102 = vsub.s32 2, %v101
    %v103 = vrot.slane %v44, %v102
    %v104 = vlaneseq
    %v105 = vshrl.u32 %v104, 7
    %v106 = vsub.s32 3, %v105
    %v107 = vrot.slane %v44, %v106
    %v112 = vsub.f32 %v81, %v95
    %v113 = vsub.f32 %v84, %v99
    %v114 = vsub.f32 %v87, %v103
    %v115 = vsub.f32 %v90, %v107
    %v116 = vmax.f32 %v112, 0.0
    %v117 = vmax.f32 %v113, 0.0
    %v118 = vmax.f32 %v114, 0.0
    %v119 = vmax.f32 %v115, 0.0
    %v120 = vsub.f32 0.0, %v116
    %v121 = vsub.f32 0.0, %v117
    %v122 = vsub.f32 0.0, %v118
    %v123 = vsub.f32 0.0, %v119
    %v124 = vmul.f32 %v120, 1.442695
    %v125 = vpow.pop %v124
    %v126 = vmul.f32 %v121, 1.442695
    %v127 = vpow.pop %v126
    %v128 = vmul.f32 %v122, 1.442695
    %v129 = vpow.pop %v128
    %v130 = vmul.f32 %v123, 1.442695
    %v131 = vpow.pop %v130
    %v132 = vsub.f32 %v112, %v116
    %v133 = vsub.f32 %v113, %v117
    %v134 = vsub.f32 %v114, %v118
    %v135 = vsub.f32 %v115, %v119
    %v136 = vmul.f32 %v132, 1.442695
    %v137 = vpow.pop %v136
    %v138 = vmul.f32 %v133, 1.442695
    %v139 = vpow.pop %v138
    %v140 = vmul.f32 %v134, 1.442695
    %v141 = vpow.pop %v140
    %v142 = vmul.f32 %v135, 1.442695
    %v143 = vpow.pop %v142
    %v144 = vadd.f32 %v137, 0.0
    %v145 = vadd.f32 %v139, 0.0
    %v146 = vadd.f32 %v141, 0.0
    %v147 = vadd.f32 %v143, 0.0
    %v148 = vadd.f32 %v125, %v144
    %v149 = vadd.f32 %v127, %v145
    %v150 = vadd.f32 %v129, %v146
    %v151 = vadd.f32 %v131, %v147
    %v152 = vlog2.pop %v148
    %v153 = vmul.f32 %v152, 0.6931472
    %v154 = vlog2.pop %v149
    %v155 = vmul.f32 %v154, 0.6931472
    %v156 = vlog2.pop %v150
    %v157 = vmul.f32 %v156, 0.6931472
    %v158 = vlog2.pop %v151
    %v159 = vmul.f32 %v158, 0.6931472
    %v160 = vadd.f32 %v116, %v153
    %v161 = vadd.f32 %v117, %v155
    %v162 = vadd.f32 %v118, %v157
    %v163 = vadd.f32 %v119, %v159
    %v168 = vrot.slane %v161, 7
    %vm169 = vcmask 1041409
    %v170 = vsel %vm169, %v168, %v160
    %v171 = vrot.slane %v162, 6
    %vm172 = vcmask 1042434
    %v173 = vsel %vm172, %v171, %v170
    %v174 = vrot.slane %v163, 5
    %vm175 = vcmask 1043459
    %v176 = vsel %vm175, %v174, %v173
    %vm178 = vcmask 3072
    %v179 = vsel %vm178, %v176, 0.0
    %180 = vadd.xlane.f32.xlu0 %v179
    %v181 = vpop.xlane.xlu0 %180
    %v182 = vrot.slane %v181, 4
    %v183 = vadd.f32 %v181, %v182
    %v184 = vrot.slane %v183, 2
    %v185 = vadd.f32 %v183, %v184
    %v186 = vrot.slane %v185, 1
    %v187 = vadd.f32 %v185, %v186
    %s188 = vtos %v187
    %v189 = vrcp.pop 4.0
    %s190 = vtos %v189
    %s191 = smul.f32 %s188, %s190
    %v192 = vld [vmem:[%s3] sm:$0xf]
    %v193 = vmul.f32 %v192, %v192
    %v194 = vsel %vm41, %v193, 0.0
    %195 = vadd.xlane.f32.xlu0 %v194
    %v196 = vpop.xlane.xlu0 %195
    %v197 = vrot.slane %v196, 4
    %v198 = vadd.f32 %v196, %v197
    %v199 = vrot.slane %v198, 2
    %v200 = vadd.f32 %v198, %v199
    %v201 = vrot.slane %v200, 1
    %v202 = vadd.f32 %v200, %v201
    %s203 = vtos %v202
    %v204 = vld [vmem:[%s4] sm:$0xf]
    %v205 = vmul.f32 %v204, %v204
    %v206 = vsel %vm41, %v205, 0.0
    %207 = vadd.xlane.f32.xlu0 %v206
    %v208 = vpop.xlane.xlu0 %207
    %v209 = vrot.slane %v208, 4
    %v210 = vadd.f32 %v208, %v209
    %v211 = vrot.slane %v210, 2
    %v212 = vadd.f32 %v210, %v211
    %v213 = vrot.slane %v212, 1
    %v214 = vadd.f32 %v212, %v213
    %s215 = vtos %v214
    %s216 = sadd.f32 %s203, %s215
    %v217 = vld [vmem:[%s5] sm:$0x1]
    %v218 = vld [vmem:[%s5 + $0x1] sm:$0x1]
    %v219 = vld [vmem:[%s5 + $0x2] sm:$0x1]
    %v220 = vld [vmem:[%s5 + $0x3] sm:$0x1]
    %v221 = vmul.f32 %v217, %v217
    %v222 = vmul.f32 %v218, %v218
    %v223 = vmul.f32 %v219, %v219
    %v224 = vmul.f32 %v220, %v220
    %v225 = vsel %vm78, %v221, 0.0
    %v226 = vsel %vm78, %v222, 0.0
    %v227 = vadd.f32 %v225, %v226
    %v228 = vsel %vm78, %v223, 0.0
    %v229 = vadd.f32 %v227, %v228
    %v230 = vsel %vm78, %v224, 0.0
    %v231 = vadd.f32 %v229, %v230
    %232 = vadd.xlane.f32.xlu0 %v231
    %v233 = vpop.xlane.xlu0 %232
    %v234 = vrot.slane %v233, 4
    %v235 = vadd.f32 %v233, %v234
    %v236 = vrot.slane %v235, 2
    %v237 = vadd.f32 %v235, %v236
    %v238 = vrot.slane %v237, 1
    %v239 = vadd.f32 %v237, %v238
    %s240 = vtos %v239
    %s241 = sadd.f32 %s216, %s240
    %s242 = smul.f32 %s241, 0.5
    %s243 = smul.f32 %s242, 0.0001
    %v244 = vrcp.pop 4.0
    %s245 = vtos %v244
    %s246 = smul.f32 %s243, %s245
    %s247 = scalar_lea.smem [#allocation4], 0
    %248 = sst [smem:[%s247]] %s191
    %s249 = scalar_lea.smem [#allocation6], 0
    %250 = sst [smem:[%s249]] %s246
    %s251 = sadd.f32 %s191, %s246
    %s252 = scalar_lea.smem [#allocation2], 0
    %253 = sst [smem:[%s252]] %s251
    // Predicated region
    $region26: #{lightgcn_forward.5} parent=1 // pred_check
      _
    $region27: #{lightgcn_forward.5} parent=1 // pred_check_branch
      %255 = sbr.rel (0) target = $region29
    $region28: #{lightgcn_forward.5} parent=1 // pred_region
      %s257 = ssub.s32 16, 16
      %258 = vsyncadd [#allocation3], %s257
      %261 = dma.smem_to_hbm [#allocation2], 16, %s6, [#allocation3]
    $region29: #{lightgcn_forward.5} parent=1 // pred_fallthru
      _
    // Predicated region
    $region30: #{lightgcn_forward.5} parent=1 // pred_check
      _
    $region31: #{lightgcn_forward.5} parent=1 // pred_check_branch
      %263 = sbr.rel (0) target = $region33
    $region32: #{lightgcn_forward.5} parent=1 // pred_region
      %s265 = ssub.s32 16, 16
      %266 = vsyncadd [#allocation5], %s265
      %269 = dma.smem_to_hbm [#allocation4], 16, %s7, [#allocation5]
    $region33: #{lightgcn_forward.5} parent=1 // pred_fallthru
      _
    // Predicated region
    $region34: #{lightgcn_forward.5} parent=1 // pred_check
      _
    $region35: #{lightgcn_forward.5} parent=1 // pred_check_branch
      %271 = sbr.rel (0) target = $region37
    $region36: #{lightgcn_forward.5} parent=1 // pred_region
      %s273 = ssub.s32 16, 16
      %274 = vsyncadd [#allocation5], %s273
      %277 = dma.smem_to_hbm [#allocation6], 16, %s8, [#allocation5]
    $region37: #{lightgcn_forward.5} parent=1 // pred_fallthru
      _
    // Predicated region
    $region38: #{lightgcn_forward.5} parent=1 // pred_check
      _
    $region39: #{lightgcn_forward.5} parent=1 // pred_check_branch
      %279 = sbr.rel (0) target = $region41
    $region40: #{lightgcn_forward.5} parent=1 // pred_region
      %280 = dma.done [#allocation3], 16
    $region41: #{lightgcn_forward.5} parent=1 // pred_fallthru
      _
    // Predicated region
    $region42: #{lightgcn_forward.5} parent=1 // pred_check
      _
    $region43: #{lightgcn_forward.5} parent=1 // pred_check_branch
      %282 = sbr.rel (0) target = $region45
    $region44: #{lightgcn_forward.5} parent=1 // pred_region
      %283 = dma.done [#allocation5], 16
    $region45: #{lightgcn_forward.5} parent=1 // pred_fallthru
      _
    // Predicated region
    $region46: #{lightgcn_forward.5} parent=1 // pred_check
      _
    $region47: #{lightgcn_forward.5} parent=1 // pred_check_branch
      %285 = sbr.rel (0) target = $region49
    $region48: #{lightgcn_forward.5} parent=1 // pred_region
      %286 = dma.done [#allocation5], 16
    $region49: #{lightgcn_forward.5} parent=1 // pred_fallthru
      _
    %287 = sfence
    %288 = vsyncpa [#allocation3], 1
    %289 = vsyncpa [#allocation5], 1

// kernel: lightgcn_forward.4
$region0: #{lightgcn_forward.4}
  #allocation0 [shape = 'u32[]', space=smem, size = 0x4, offset = 0x4, fixed_abs, tag = 'smem constant byte address 0x4 - core index']
  #allocation1 [shape = 'u32[144,128]{1,0:T(1,128)}', space=vmem, size = 0x12000, scoped, tag = 'internal scratch']
  #allocation2 [shape = 'f32[256,128]{1,0:T(8,128)}', space=vmem, size = 0x20000, scoped, tag = 'scratch operand']
  %s0 = inlined_call_operand.vmem [shape: bf16[256,256], index: 0, kind: input, shape index: {}]
  %s1 = inlined_call_operand.vmem [shape: bf16[256,128], index: 1, kind: input, shape index: {}]
  %s2 = inlined_call_operand.vmem [shape: f32[256,128], index: 2, kind: input, shape index: {}, may-alias: {2,4}]
  %s3 = inlined_call_operand.hbm [shape: bf16[256,128], index: 3, kind: output, shape index: {0}]
  %s4 = inlined_call_operand.vmem [shape: f32[256,128], index: 4, kind: output, shape index: {1}, may-alias: {2,4}]
  %5 = xla_tuple %s3, %s4
  %s6 = sld [smem:[#allocation0]]
  $region42: #{lightgcn_forward.4} parent=0
    _
  %s8 = ssub.s32 1, %s6
  %s9 = scalar_select 0, %s8, %s6
  $region1: #{lightgcn_forward.4} parent=0
    #allocation3 [shape = 'u8[65536]{0}', space=vmem, size = 0x10000, scoped, tag = 'output window, operand 0, single buffered']
    #allocation4 [shape = 's32[1]{0}', space=sflag, size = 0x4, scoped, tag = 'scoped memory for lightgcn_forward.4']
    %10 = vsyncpa [#allocation4], 0
    // Predicated region
    $region2: #{lightgcn_forward.4} parent=1 // pred_check
      _
    $region3: #{lightgcn_forward.4} parent=1 // pred_check_branch
      %12 = sbr.rel (0) target = $region5
    $region4: #{lightgcn_forward.4} parent=1 // pred_region
      _
    $region5: #{lightgcn_forward.4} parent=1 // pred_fallthru
      _
    // Predicated region
    $region6: #{lightgcn_forward.4} parent=1 // pred_check
      _
    $region7: #{lightgcn_forward.4} parent=1 // pred_check_branch
      %14 = sbr.rel (0) target = $region9
    $region8: #{lightgcn_forward.4} parent=1 // pred_region
      _
    $region9: #{lightgcn_forward.4} parent=1 // pred_fallthru
      _
    // Predicated region
    $region10: #{lightgcn_forward.4} parent=1 // pred_check
      _
    $region11: #{lightgcn_forward.4} parent=1 // pred_check_branch
      %16 = sbr.rel (0) target = $region13
    $region12: #{lightgcn_forward.4} parent=1 // pred_region
      _
    $region13: #{lightgcn_forward.4} parent=1 // pred_fallthru
      _
    %s18 = smul.u32 0, 256
    %s19 = sshra.s32 %s18, 3
    %s20 = sand.u32 %s18, 7
    %s21 = smul.addr %s19, 4
    %s22 = scalar_lea.vmem %s1, %s21
    %v23 = vld [vmem:[%s22] sm:$0xf]
    %v24 = vld [vmem:[%s22 + $0x4] sm:$0xf]
    %v25 = vld [vmem:[%s22 + $0x8] sm:$0xf]
    %v26 = vld [vmem:[%s22 + $0xc] sm:$0xf]
    %v27 = vld [vmem:[%s22 + $0x10] sm:$0xf]
    %v28 = vld [vmem:[%s22 + $0x14] sm:$0xf]
    %v29 = vld [vmem:[%s22 + $0x18] sm:$0xf]
    %v30 = vld [vmem:[%s22 + $0x1c] sm:$0xf]
    %v31 = vld [vmem:[%s22 + $0x20] sm:$0xf]
    %v32 = vld [vmem:[%s22 + $0x24] sm:$0xf]
    %v33 = vld [vmem:[%s22 + $0x28] sm:$0xf]
    %v34 = vld [vmem:[%s22 + $0x2c] sm:$0xf]
    %v35 = vld [vmem:[%s22 + $0x30] sm:$0xf]
    %v36 = vld [vmem:[%s22 + $0x34] sm:$0xf]
    %v37 = vld [vmem:[%s22 + $0x38] sm:$0xf]
    %v38 = vld [vmem:[%s22 + $0x3c] sm:$0xf]
    %v39 = vld [vmem:[%s22 + $0x40] sm:$0xf]
    %v40 = vld [vmem:[%s22 + $0x44] sm:$0xf]
    %v41 = vld [vmem:[%s22 + $0x48] sm:$0xf]
    %v42 = vld [vmem:[%s22 + $0x4c] sm:$0xf]
    %v43 = vld [vmem:[%s22 + $0x50] sm:$0xf]
    %v44 = vld [vmem:[%s22 + $0x54] sm:$0xf]
    %v45 = vld [vmem:[%s22 + $0x58] sm:$0xf]
    %v46 = vld [vmem:[%s22 + $0x5c] sm:$0xf]
    %v47 = vld [vmem:[%s22 + $0x60] sm:$0xf]
    %v48 = vld [vmem:[%s22 + $0x64] sm:$0xf]
    %v49 = vld [vmem:[%s22 + $0x68] sm:$0xf]
    %v50 = vld [vmem:[%s22 + $0x6c] sm:$0xf]
    %v51 = vld [vmem:[%s22 + $0x70] sm:$0xf]
    %v52 = vld [vmem:[%s22 + $0x74] sm:$0xf]
    %v53 = vld [vmem:[%s22 + $0x78] sm:$0xf]
    %v54 = vld [vmem:[%s22 + $0x7c] sm:$0xf]
    %v55 = vld [vmem:[%s0] sm:$0xff]
    %v56 = vld [vmem:[%s0 + $0x8] sm:$0xff]
    %v57 = vld [vmem:[%s0 + $0x10] sm:$0xff]
    %v58 = vld [vmem:[%s0 + $0x18] sm:$0xff]
    %v59 = vld [vmem:[%s0 + $0x20] sm:$0xff]
    %v60 = vld [vmem:[%s0 + $0x28] sm:$0xff]
    %v61 = vld [vmem:[%s0 + $0x30] sm:$0xff]
    %v62 = vld [vmem:[%s0 + $0x38] sm:$0xff]
    %v63 = vld [vmem:[%s0 + $0x40] sm:$0xff]
    %v64 = vld [vmem:[%s0 + $0x48] sm:$0xff]
    %v65 = vld [vmem:[%s0 + $0x50] sm:$0xff]
    %v66 = vld [vmem:[%s0 + $0x58] sm:$0xff]
    %v67 = vld [vmem:[%s0 + $0x60] sm:$0xff]
    %v68 = vld [vmem:[%s0 + $0x68] sm:$0xff]
    %v69 = vld [vmem:[%s0 + $0x70] sm:$0xff]
    %v70 = vld [vmem:[%s0 + $0x78] sm:$0xff]
    %v71 = vld [vmem:[%s0 + $0x80] sm:$0xff]
    %v72 = vld [vmem:[%s0 + $0x88] sm:$0xff]
    %v73 = vld [vmem:[%s0 + $0x90] sm:$0xff]
    %v74 = vld [vmem:[%s0 + $0x98] sm:$0xff]
    %v75 = vld [vmem:[%s0 + $0xa0] sm:$0xff]
    %v76 = vld [vmem:[%s0 + $0xa8] sm:$0xff]
    %v77 = vld [vmem:[%s0 + $0xb0] sm:$0xff]
    %v78 = vld [vmem:[%s0 + $0xb8] sm:$0xff]
    %v79 = vld [vmem:[%s0 + $0xc0] sm:$0xff]
    %v80 = vld [vmem:[%s0 + $0xc8] sm:$0xff]
    %v81 = vld [vmem:[%s0 + $0xd0] sm:$0xff]
    %v82 = vld [vmem:[%s0 + $0xd8] sm:$0xff]
    %v83 = vld [vmem:[%s0 + $0xe0] sm:$0xff]
    %v84 = vld [vmem:[%s0 + $0xe8] sm:$0xff]
    %v85 = vld [vmem:[%s0 + $0xf0] sm:$0xff]
    %v86 = vld [vmem:[%s0 + $0xf8] sm:$0xff]
    %v119 = vunpack.c.l.b16 %v55
    %v120 = vunpack.c.h.b16 %v55
    %v121 = vunpack.c.l.b16 %v56
    %v122 = vunpack.c.h.b16 %v56
    %v123 = vunpack.c.l.b16 %v57
    %v124 = vunpack.c.h.b16 %v57
    %v125 = vunpack.c.l.b16 %v58
    %v126 = vunpack.c.h.b16 %v58
    %v127 = vunpack.c.l.b16 %v59
    %v128 = vunpack.c.h.b16 %v59
    %v129 = vunpack.c.l.b16 %v60
    %v130 = vunpack.c.h.b16 %v60
    %v131 = vunpack.c.l.b16 %v61
    %v132 = vunpack.c.h.b16 %v61
    %v133 = vunpack.c.l.b16 %v62
    %v134 = vunpack.c.h.b16 %v62
    %v135 = vunpack.c.l.b16 %v63
    %v136 = vunpack.c.h.b16 %v63
    %v137 = vunpack.c.l.b16 %v64
    %v138 = vunpack.c.h.b16 %v64
    %v139 = vunpack.c.l.b16 %v65
    %v140 = vunpack.c.h.b16 %v65
    %v141 = vunpack.c.l.b16 %v66
    %v142 = vunpack.c.h.b16 %v66
    %v143 = vunpack.c.l.b16 %v67
    %v144 = vunpack.c.h.b16 %v67
    %v145 = vunpack.c.l.b16 %v68
    %v146 = vunpack.c.h.b16 %v68
    %v147 = vunpack.c.l.b16 %v69
    %v148 = vunpack.c.h.b16 %v69
    %v149 = vunpack.c.l.b16 %v70
    %v150 = vunpack.c.h.b16 %v70
    %v151 = vunpack.c.l.b16 %v71
    %v152 = vunpack.c.h.b16 %v71
    %v153 = vunpack.c.l.b16 %v72
    %v154 = vunpack.c.h.b16 %v72
    %v155 = vunpack.c.l.b16 %v73
    %v156 = vunpack.c.h.b16 %v73
    %v157 = vunpack.c.l.b16 %v74
    %v158 = vunpack.c.h.b16 %v74
    %v159 = vunpack.c.l.b16 %v75
    %v160 = vunpack.c.h.b16 %v75
    %v161 = vunpack.c.l.b16 %v76
    %v162 = vunpack.c.h.b16 %v76
    %v163 = vunpack.c.l.b16 %v77
    %v164 = vunpack.c.h.b16 %v77
    %v165 = vunpack.c.l.b16 %v78
    %v166 = vunpack.c.h.b16 %v78
    %v167 = vunpack.c.l.b16 %v79
    %v168 = vunpack.c.h.b16 %v79
    %v169 = vunpack.c.l.b16 %v80
    %v170 = vunpack.c.h.b16 %v80
    %v171 = vunpack.c.l.b16 %v81
    %v172 = vunpack.c.h.b16 %v81
    %v173 = vunpack.c.l.b16 %v82
    %v174 = vunpack.c.h.b16 %v82
    %v175 = vunpack.c.l.b16 %v83
    %v176 = vunpack.c.h.b16 %v83
    %v177 = vunpack.c.l.b16 %v84
    %v178 = vunpack.c.h.b16 %v84
    %v179 = vunpack.c.l.b16 %v85
    %v180 = vunpack.c.h.b16 %v85
    %v181 = vunpack.c.l.b16 %v86
    %v182 = vunpack.c.h.b16 %v86
    %v183 = vpack.c.b16 %v121, %v119
    %v184 = vpack.c.b16 %v122, %v120
    %v185 = vpack.c.b16 %v125, %v123
    %v186 = vpack.c.b16 %v126, %v124
    %v187 = vpack.c.b16 %v129, %v127
    %v188 = vpack.c.b16 %v130, %v128
    %v189 = vpack.c.b16 %v133, %v131
    %v190 = vpack.c.b16 %v134, %v132
    %v191 = vpack.c.b16 %v137, %v135
    %v192 = vpack.c.b16 %v138, %v136
    %v193 = vpack.c.b16 %v141, %v139
    %v194 = vpack.c.b16 %v142, %v140
    %v195 = vpack.c.b16 %v145, %v143
    %v196 = vpack.c.b16 %v146, %v144
    %v197 = vpack.c.b16 %v149, %v147
    %v198 = vpack.c.b16 %v150, %v148
    %v199 = vpack.c.b16 %v153, %v151
    %v200 = vpack.c.b16 %v154, %v152
    %v201 = vpack.c.b16 %v157, %v155
    %v202 = vpack.c.b16 %v158, %v156
    %v203 = vpack.c.b16 %v161, %v159
    %v204 = vpack.c.b16 %v162, %v160
    %v205 = vpack.c.b16 %v165, %v163
    %v206 = vpack.c.b16 %v166, %v164
    %v207 = vpack.c.b16 %v169, %v167
    %v208 = vpack.c.b16 %v170, %v168
    %v209 = vpack.c.b16 %v173, %v171
    %v210 = vpack.c.b16 %v174, %v172
    %v211 = vpack.c.b16 %v177, %v175
    %v212 = vpack.c.b16 %v178, %v176
    %v213 = vpack.c.b16 %v181, %v179
    %v214 = vpack.c.b16 %v182, %v180
    %v279 = vunpack.c.l.b16 %v23
    %v280 = vunpack.c.l.b16 %v24
    %v281 = vunpack.c.l.b16 %v25
    %v282 = vunpack.c.l.b16 %v26
    %v283 = vunpack.c.l.b16 %v27
    %v284 = vunpack.c.l.b16 %v28
    %v285 = vunpack.c.l.b16 %v29
    %v286 = vunpack.c.l.b16 %v30
    %v287 = vunpack.c.l.b16 %v31
    %v288 = vunpack.c.l.b16 %v32
    %v289 = vunpack.c.l.b16 %v33
    %v290 = vunpack.c.l.b16 %v34
    %v291 = vunpack.c.l.b16 %v35
    %v292 = vunpack.c.l.b16 %v36
    %v293 = vunpack.c.l.b16 %v37
    %v294 = vunpack.c.l.b16 %v38
    %v295 = vunpack.c.l.b16 %v39
    %v296 = vunpack.c.l.b16 %v40
    %v297 = vunpack.c.l.b16 %v41
    %v298 = vunpack.c.l.b16 %v42
    %v299 = vunpack.c.l.b16 %v43
    %v300 = vunpack.c.l.b16 %v44
    %v301 = vunpack.c.l.b16 %v45
    %v302 = vunpack.c.l.b16 %v46
    %v303 = vunpack.c.l.b16 %v47
    %v304 = vunpack.c.l.b16 %v48
    %v305 = vunpack.c.l.b16 %v49
    %v306 = vunpack.c.l.b16 %v50
    %v307 = vunpack.c.l.b16 %v51
    %v308 = vunpack.c.l.b16 %v52
    %v309 = vunpack.c.l.b16 %v53
    %v310 = vunpack.c.l.b16 %v54
    %v311 = vpack.c.b16 %v280, %v279
    %v312 = vpack.c.b16 %v282, %v281
    %v313 = vpack.c.b16 %v284, %v283
    %v314 = vpack.c.b16 %v286, %v285
    %v315 = vpack.c.b16 %v288, %v287
    %v316 = vpack.c.b16 %v290, %v289
    %v317 = vpack.c.b16 %v292, %v291
    %v318 = vpack.c.b16 %v294, %v293
    %v319 = vpack.c.b16 %v296, %v295
    %v320 = vpack.c.b16 %v298, %v297
    %v321 = vpack.c.b16 %v300, %v299
    %v322 = vpack.c.b16 %v302, %v301
    %v323 = vpack.c.b16 %v304, %v303
    %v324 = vpack.c.b16 %v306, %v305
    %v325 = vpack.c.b16 %v308, %v307
    %v326 = vpack.c.b16 %v310, %v309
    %343 = vmatprep.subr.bf16.mxu0 0
    %344 = vmatpush1.bf16.msra.mxu0 %v311
    %345 = vmatprep.subr.bf16.mxu0 0
    %346 = vmatpush1.bf16.msra.mxu0 %v312
    %347 = vmatprep.subr.bf16.mxu0 0
    %348 = vmatpush1.bf16.msra.mxu0 %v313
    %349 = vmatprep.subr.bf16.mxu0 0
    %350 = vmatpush1.bf16.msra.mxu0 %v314
    %351 = vmatprep.subr.bf16.mxu0 0
    %352 = vmatpush1.bf16.msra.mxu0 %v315
    %353 = vmatprep.subr.bf16.mxu0 0
    %354 = vmatpush1.bf16.msra.mxu0 %v316
    %355 = vmatprep.subr.bf16.mxu0 0
    %356 = vmatpush1.bf16.msra.mxu0 %v317
    %357 = vmatprep.subr.bf16.mxu0 0
    %358 = vmatpush1.bf16.msra.mxu0 %v318
    %359 = vmatprep.subr.bf16.mxu0 0
    %360 = vmatpush1.bf16.msra.mxu0 %v319
    %361 = vmatprep.subr.bf16.mxu0 0
    %362 = vmatpush1.bf16.msra.mxu0 %v320
    %363 = vmatprep.subr.bf16.mxu0 0
    %364 = vmatpush1.bf16.msra.mxu0 %v321
    %365 = vmatprep.subr.bf16.mxu0 0
    %366 = vmatpush1.bf16.msra.mxu0 %v322
    %367 = vmatprep.subr.bf16.mxu0 0
    %368 = vmatpush1.bf16.msra.mxu0 %v323
    %369 = vmatprep.subr.bf16.mxu0 0
    %370 = vmatpush1.bf16.msra.mxu0 %v324
    %371 = vmatprep.subr.bf16.mxu0 0
    %372 = vmatpush1.bf16.msra.mxu0 %v325
    %373 = vmatprep.subr.bf16.mxu0 0
    %374 = vmatpush1.bf16.msra.mxu0 %v326
    %375 = vmatprep.mubr.bf16.mxu0 %v184
    %376 = vmatmul.mubr.bf16.gmra.mrb[0].mxu0 %v183
    %v377 = vpop.f32.mrb[0].mxu0
    %v378 = vadd.f32 0.0, %v377
    %v379 = vpop.f32.mrb[0].mxu0
    %v380 = vpop.f32.mrb[0].mxu0
    %v381 = vadd.f32 0.0, %v380
    %v382 = vpop.f32.mrb[0].mxu0
    %383 = vmatprep.mubr.bf16.mxu0 %v186
    %384 = vmatmul.mubr.bf16.gmra.mrb[0].mxu0 %v185
    %v385 = vpop.f32.mrb[0].mxu0
    %v386 = vadd.f32 0.0, %v385
    %v387 = vpop.f32.mrb[0].mxu0
    %v388 = vpop.f32.mrb[0].mxu0
    %v389 = vadd.f32 0.0, %v388
    %v390 = vpop.f32.mrb[0].mxu0
    %391 = vmatprep.mubr.bf16.mxu0 %v188
    %392 = vmatmul.mubr.bf16.gmra.mrb[0].mxu0 %v187
    %v393 = vpop.f32.mrb[0].mxu0
    %v394 = vadd.f32 0.0, %v393
    %v395 = vpop.f32.mrb[0].mxu0
    %v396 = vpop.f32.mrb[0].mxu0
    %v397 = vadd.f32 0.0, %v396
    %v398 = vpop.f32.mrb[0].mxu0
    %399 = vmatprep.mubr.bf16.mxu0 %v190
    %400 = vmatmul.mubr.bf16.gmra.mrb[0].mxu0 %v189
    %v401 = vpop.f32.mrb[0].mxu0
    %v402 = vadd.f32 0.0, %v401
    %v403 = vpop.f32.mrb[0].mxu0
    %v404 = vpop.f32.mrb[0].mxu0
    %v405 = vadd.f32 0.0, %v404
    %v406 = vpop.f32.mrb[0].mxu0
    %407 = vmatprep.mubr.bf16.mxu0 %v192
    %408 = vmatmul.mubr.bf16.gmra.mrb[0].mxu0 %v191
    %v409 = vpop.f32.mrb[0].mxu0
    %v410 = vadd.f32 0.0, %v409
    %v411 = vpop.f32.mrb[0].mxu0
    %v412 = vpop.f32.mrb[0].mxu0
    %v413 = vadd.f32 0.0, %v412
    %v414 = vpop.f32.mrb[0].mxu0
    %415 = vmatprep.mubr.bf16.mxu0 %v194
    %416 = vmatmul.mubr.bf16.gmra.mrb[0].mxu0 %v193
    %v417 = vpop.f32.mrb[0].mxu0
    %v418 = vadd.f32 0.0, %v417
    %v419 = vpop.f32.mrb[0].mxu0
    %v420 = vpop.f32.mrb[0].mxu0
    %v421 = vadd.f32 0.0, %v420
    %v422 = vpop.f32.mrb[0].mxu0
    %423 = vmatprep.mubr.bf16.mxu0 %v196
    %424 = vmatmul.mubr.bf16.gmra.mrb[0].mxu0 %v195
    %v425 = vpop.f32.mrb[0].mxu0
    %v426 = vadd.f32 0.0, %v425
    %v427 = vpop.f32.mrb[0].mxu0
    %v428 = vpop.f32.mrb[0].mxu0
    %v429 = vadd.f32 0.0, %v428
    %v430 = vpop.f32.mrb[0].mxu0
    %431 = vmatprep.mubr.bf16.mxu0 %v198
    %432 = vmatmul.mubr.bf16.gmra.mrb[0].mxu0 %v197
    %v433 = vpop.f32.mrb[0].mxu0
    %v434 = vadd.f32 0.0, %v433
    %v435 = vpop.f32.mrb[0].mxu0
    %v436 = vpop.f32.mrb[0].mxu0
    %v437 = vadd.f32 0.0, %v436
    %v438 = vpop.f32.mrb[0].mxu0
    %439 = vmatprep.mubr.bf16.mxu0 %v200
    %440 = vmatmul.mubr.bf16.gmra.mrb[0].mxu0 %v199
    %v441 = vpop.f32.mrb[0].mxu0
    %v442 = vadd.f32 0.0, %v441
    %v443 = vpop.f32.mrb[0].mxu0
    %v444 = vpop.f32.mrb[0].mxu0
    %v445 = vadd.f32 0.0, %v444
    %v446 = vpop.f32.mrb[0].mxu0
    %447 = vmatprep.mubr.bf16.mxu0 %v202
    %448 = vmatmul.mubr.bf16.gmra.mrb[0].mxu0 %v201
    %v449 = vpop.f32.mrb[0].mxu0
    %v450 = vadd.f32 0.0, %v449
    %v451 = vpop.f32.mrb[0].mxu0
    %v452 = vpop.f32.mrb[0].mxu0
    %v453 = vadd.f32 0.0, %v452
    %v454 = vpop.f32.mrb[0].mxu0
    %455 = vmatprep.mubr.bf16.mxu0 %v204
    %456 = vmatmul.mubr.bf16.gmra.mrb[0].mxu0 %v203
    %v457 = vpop.f32.mrb[0].mxu0
    %v458 = vadd.f32 0.0, %v457
    %v459 = vpop.f32.mrb[0].mxu0
    %v460 = vpop.f32.mrb[0].mxu0
    %v461 = vadd.f32 0.0, %v460
    %v462 = vpop.f32.mrb[0].mxu0
    %463 = vmatprep.mubr.bf16.mxu0 %v206
    %464 = vmatmul.mubr.bf16.gmra.mrb[0].mxu0 %v205
    %v465 = vpop.f32.mrb[0].mxu0
    %v466 = vadd.f32 0.0, %v465
    %v467 = vpop.f32.mrb[0].mxu0
    %v468 = vpop.f32.mrb[0].mxu0
    %v469 = vadd.f32 0.0, %v468
    %v470 = vpop.f32.mrb[0].mxu0
    %471 = vmatprep.mubr.bf16.mxu0 %v208
    %472 = vmatmul.mubr.bf16.gmra.mrb[0].mxu0 %v207
    %v473 = vpop.f32.mrb[0].mxu0
    %v474 = vadd.f32 0.0, %v473
    %v475 = vpop.f32.mrb[0].mxu0
    %v476 = vpop.f32.mrb[0].mxu0
    %v477 = vadd.f32 0.0, %v476
    %v478 = vpop.f32.mrb[0].mxu0
    %479 = vmatprep.mubr.bf16.mxu0 %v210
    %480 = vmatmul.mubr.bf16.gmra.mrb[0].mxu0 %v209
    %v481 = vpop.f32.mrb[0].mxu0
    %v482 = vadd.f32 0.0, %v481
    %v483 = vpop.f32.mrb[0].mxu0
    %v484 = vpop.f32.mrb[0].mxu0
    %v485 = vadd.f32 0.0, %v484
    %v486 = vpop.f32.mrb[0].mxu0
    %487 = vmatprep.mubr.bf16.mxu0 %v212
    %488 = vmatmul.mubr.bf16.gmra.mrb[0].mxu0 %v211
    %v489 = vpop.f32.mrb[0].mxu0
    %v490 = vadd.f32 0.0, %v489
    %v491 = vpop.f32.mrb[0].mxu0
    %v492 = vpop.f32.mrb[0].mxu0
    %v493 = vadd.f32 0.0, %v492
    %v494 = vpop.f32.mrb[0].mxu0
    %495 = vmatprep.mubr.bf16.mxu0 %v214
    %496 = vmatmul.mubr.bf16.gmra.mrb[0].mxu0 %v213
    %v497 = vpop.f32.mrb[0].mxu0
    %v498 = vadd.f32 0.0, %v497
    %v499 = vpop.f32.mrb[0].mxu0
    %v500 = vpop.f32.mrb[0].mxu0
    %v501 = vadd.f32 0.0, %v500
    %v502 = vpop.f32.mrb[0].mxu0
    %503 = vdwg.mxu0
    %p504 = scmp.eq.s32.totalorder 0, 0
    // Predicated region
    $region14: #{lightgcn_forward.4} parent=1 // pred_check
      %p505 = pneg %p504
    $region15: #{lightgcn_forward.4} parent=1 // pred_check_branch
      %507 = sbr.rel (%p505) target = $region17
    $region16: #{lightgcn_forward.4} parent=1 // pred_region
      %508 = vst [vmem:[#allocation2] sm:$0xff] %v378
      %509 = vst [vmem:[#allocation2 + $0x8] sm:$0xff] %v381
      %510 = vst [vmem:[#allocation2 + $0x10] sm:$0xff] %v386
      %511 = vst [vmem:[#allocation2 + $0x18] sm:$0xff] %v389
      %512 = vst [vmem:[#allocation2 + $0x20] sm:$0xff] %v394
      %513 = vst [vmem:[#allocation2 + $0x28] sm:$0xff] %v397
      %514 = vst [vmem:[#allocation2 + $0x30] sm:$0xff] %v402
      %515 = vst [vmem:[#allocation2 + $0x38] sm:$0xff] %v405
      %516 = vst [vmem:[#allocation2 + $0x40] sm:$0xff] %v410
      %517 = vst [vmem:[#allocation2 + $0x48] sm:$0xff] %v413
      %518 = vst [vmem:[#allocation2 + $0x50] sm:$0xff] %v418
      %519 = vst [vmem:[#allocation2 + $0x58] sm:$0xff] %v421
      %520 = vst [vmem:[#allocation2 + $0x60] sm:$0xff] %v426
      %521 = vst [vmem:[#allocation2 + $0x68] sm:$0xff] %v429
      %522 = vst [vmem:[#allocation2 + $0x70] sm:$0xff] %v434
      %523 = vst [vmem:[#allocation2 + $0x78] sm:$0xff] %v437
      %524 = vst [vmem:[#allocation2 + $0x80] sm:$0xff] %v442
      %525 = vst [vmem:[#allocation2 + $0x88] sm:$0xff] %v445
      %526 = vst [vmem:[#allocation2 + $0x90] sm:$0xff] %v450
      %527 = vst [vmem:[#allocation2 + $0x98] sm:$0xff] %v453
      %528 = vst [vmem:[#allocation2 + $0xa0] sm:$0xff] %v458
      %529 = vst [vmem:[#allocation2 + $0xa8] sm:$0xff] %v461
      %530 = vst [vmem:[#allocation2 + $0xb0] sm:$0xff] %v466
      %531 = vst [vmem:[#allocation2 + $0xb8] sm:$0xff] %v469
      %532 = vst [vmem:[#allocation2 + $0xc0] sm:$0xff] %v474
      %533 = vst [vmem:[#allocation2 + $0xc8] sm:$0xff] %v477
      %534 = vst [vmem:[#allocation2 + $0xd0] sm:$0xff] %v482
      %535 = vst [vmem:[#allocation2 + $0xd8] sm:$0xff] %v485
      %536 = vst [vmem:[#allocation2 + $0xe0] sm:$0xff] %v490
      %537 = vst [vmem:[#allocation2 + $0xe8] sm:$0xff] %v493
      %538 = vst [vmem:[#allocation2 + $0xf0] sm:$0xff] %v498
      %539 = vst [vmem:[#allocation2 + $0xf8] sm:$0xff] %v501
    $region17: #{lightgcn_forward.4} parent=1 // pred_fallthru
      _
    %p540 = scmp.gt.s32.totalorder 0, 0
    // Predicated region
    $region18: #{lightgcn_forward.4} parent=1 // pred_check
      %p541 = pneg %p540
    $region19: #{lightgcn_forward.4} parent=1 // pred_check_branch
      %543 = sbr.rel (%p541) target = $region21
    $region20: #{lightgcn_forward.4} parent=1 // pred_region
      %v544 = vld [vmem:[#allocation2] sm:$0xff]
      %v545 = vld [vmem:[#allocation2 + $0x8] sm:$0xff]
      %v546 = vld [vmem:[#allocation2 + $0x10] sm:$0xff]
      %v547 = vld [vmem:[#allocation2 + $0x18] sm:$0xff]
      %v548 = vld [vmem:[#allocation2 + $0x20] sm:$0xff]
      %v549 = vld [vmem:[#allocation2 + $0x28] sm:$0xff]
      %v550 = vld [vmem:[#allocation2 + $0x30] sm:$0xff]
      %v551 = vld [vmem:[#allocation2 + $0x38] sm:$0xff]
      %v552 = vld [vmem:[#allocation2 + $0x40] sm:$0xff]
      %v553 = vld [vmem:[#allocation2 + $0x48] sm:$0xff]
      %v554 = vld [vmem:[#allocation2 + $0x50] sm:$0xff]
      %v555 = vld [vmem:[#allocation2 + $0x58] sm:$0xff]
      %v556 = vld [vmem:[#allocation2 + $0x60] sm:$0xff]
      %v557 = vld [vmem:[#allocation2 + $0x68] sm:$0xff]
      %v558 = vld [vmem:[#allocation2 + $0x70] sm:$0xff]
      %v559 = vld [vmem:[#allocation2 + $0x78] sm:$0xff]
      %v560 = vld [vmem:[#allocation2 + $0x80] sm:$0xff]
      %v561 = vld [vmem:[#allocation2 + $0x88] sm:$0xff]
      %v562 = vld [vmem:[#allocation2 + $0x90] sm:$0xff]
      %v563 = vld [vmem:[#allocation2 + $0x98] sm:$0xff]
      %v564 = vld [vmem:[#allocation2 + $0xa0] sm:$0xff]
      %v565 = vld [vmem:[#allocation2 + $0xa8] sm:$0xff]
      %v566 = vld [vmem:[#allocation2 + $0xb0] sm:$0xff]
      %v567 = vld [vmem:[#allocation2 + $0xb8] sm:$0xff]
      %v568 = vld [vmem:[#allocation2 + $0xc0] sm:$0xff]
      %v569 = vld [vmem:[#allocation2 + $0xc8] sm:$0xff]
      %v570 = vld [vmem:[#allocation2 + $0xd0] sm:$0xff]
      %v571 = vld [vmem:[#allocation2 + $0xd8] sm:$0xff]
      %v572 = vld [vmem:[#allocation2 + $0xe0] sm:$0xff]
      %v573 = vld [vmem:[#allocation2 + $0xe8] sm:$0xff]
      %v574 = vld [vmem:[#allocation2 + $0xf0] sm:$0xff]
      %v575 = vld [vmem:[#allocation2 + $0xf8] sm:$0xff]
      %v576 = vadd.f32 %v544, %v378
      %v577 = vadd.f32 %v545, %v381
      %v578 = vadd.f32 %v546, %v386
      %v579 = vadd.f32 %v547, %v389
      %v580 = vadd.f32 %v548, %v394
      %v581 = vadd.f32 %v549, %v397
      %v582 = vadd.f32 %v550, %v402
      %v583 = vadd.f32 %v551, %v405
      %v584 = vadd.f32 %v552, %v410
      %v585 = vadd.f32 %v553, %v413
      %v586 = vadd.f32 %v554, %v418
      %v587 = vadd.f32 %v555, %v421
      %v588 = vadd.f32 %v556, %v426
      %v589 = vadd.f32 %v557, %v429
      %v590 = vadd.f32 %v558, %v434
      %v591 = vadd.f32 %v559, %v437
      %v592 = vadd.f32 %v560, %v442
      %v593 = vadd.f32 %v561, %v445
      %v594 = vadd.f32 %v562, %v450
      %v595 = vadd.f32 %v563, %v453
      %v596 = vadd.f32 %v564, %v458
      %v597 = vadd.f32 %v565, %v461
      %v598 = vadd.f32 %v566, %v466
      %v599 = vadd.f32 %v567, %v469
      %v600 = vadd.f32 %v568, %v474
      %v601 = vadd.f32 %v569, %v477
      %v602 = vadd.f32 %v570, %v482
      %v603 = vadd.f32 %v571, %v485
      %v604 = vadd.f32 %v572, %v490
      %v605 = vadd.f32 %v573, %v493
      %v606 = vadd.f32 %v574, %v498
      %v607 = vadd.f32 %v575, %v501
      %608 = vst [vmem:[#allocation2] sm:$0xff] %v576
      %609 = vst [vmem:[#allocation2 + $0x8] sm:$0xff] %v577
      %610 = vst [vmem:[#allocation2 + $0x10] sm:$0xff] %v578
      %611 = vst [vmem:[#allocation2 + $0x18] sm:$0xff] %v579
      %612 = vst [vmem:[#allocation2 + $0x20] sm:$0xff] %v580
      %613 = vst [vmem:[#allocation2 + $0x28] sm:$0xff] %v581
      %614 = vst [vmem:[#allocation2 + $0x30] sm:$0xff] %v582
      %615 = vst [vmem:[#allocation2 + $0x38] sm:$0xff] %v583
      %616 = vst [vmem:[#allocation2 + $0x40] sm:$0xff] %v584
      %617 = vst [vmem:[#allocation2 + $0x48] sm:$0xff] %v585
      %618 = vst [vmem:[#allocation2 + $0x50] sm:$0xff] %v586
      %619 = vst [vmem:[#allocation2 + $0x58] sm:$0xff] %v587
      %620 = vst [vmem:[#allocation2 + $0x60] sm:$0xff] %v588
      %621 = vst [vmem:[#allocation2 + $0x68] sm:$0xff] %v589
      %622 = vst [vmem:[#allocation2 + $0x70] sm:$0xff] %v590
      %623 = vst [vmem:[#allocation2 + $0x78] sm:$0xff] %v591
      %624 = vst [vmem:[#allocation2 + $0x80] sm:$0xff] %v592
      %625 = vst [vmem:[#allocation2 + $0x88] sm:$0xff] %v593
      %626 = vst [vmem:[#allocation2 + $0x90] sm:$0xff] %v594
      %627 = vst [vmem:[#allocation2 + $0x98] sm:$0xff] %v595
      %628 = vst [vmem:[#allocation2 + $0xa0] sm:$0xff] %v596
      %629 = vst [vmem:[#allocation2 + $0xa8] sm:$0xff] %v597
      %630 = vst [vmem:[#allocation2 + $0xb0] sm:$0xff] %v598
      %631 = vst [vmem:[#allocation2 + $0xb8] sm:$0xff] %v599
      %632 = vst [vmem:[#allocation2 + $0xc0] sm:$0xff] %v600
      %633 = vst [vmem:[#allocation2 + $0xc8] sm:$0xff] %v601
      %634 = vst [vmem:[#allocation2 + $0xd0] sm:$0xff] %v602
      %635 = vst [vmem:[#allocation2 + $0xd8] sm:$0xff] %v603
      %636 = vst [vmem:[#allocation2 + $0xe0] sm:$0xff] %v604
      %637 = vst [vmem:[#allocation2 + $0xe8] sm:$0xff] %v605
      %638 = vst [vmem:[#allocation2 + $0xf0] sm:$0xff] %v606
      %639 = vst [vmem:[#allocation2 + $0xf8] sm:$0xff] %v607
    $region21: #{lightgcn_forward.4} parent=1 // pred_fallthru
      _
    // Predicated region
    $region22: #{lightgcn_forward.4} parent=1 // pred_check
      %p640 = pneg %p504
    $region23: #{lightgcn_forward.4} parent=1 // pred_check_branch
      %642 = sbr.rel (%p640) target = $region25
    $region24: #{lightgcn_forward.4} parent=1 // pred_region
      %v643 = vld [vmem:[#allocation2] sm:$0xff]
      %v644 = vld [vmem:[#allocation2 + $0x8] sm:$0xff]
      %v645 = vld [vmem:[#allocation2 + $0x10] sm:$0xff]
      %v646 = vld [vmem:[#allocation2 + $0x18] sm:$0xff]
      %v647 = vld [vmem:[#allocation2 + $0x20] sm:$0xff]
      %v648 = vld [vmem:[#allocation2 + $0x28] sm:$0xff]
      %v649 = vld [vmem:[#allocation2 + $0x30] sm:$0xff]
      %v650 = vld [vmem:[#allocation2 + $0x38] sm:$0xff]
      %v651 = vld [vmem:[#allocation2 + $0x40] sm:$0xff]
      %v652 = vld [vmem:[#allocation2 + $0x48] sm:$0xff]
      %v653 = vld [vmem:[#allocation2 + $0x50] sm:$0xff]
      %v654 = vld [vmem:[#allocation2 + $0x58] sm:$0xff]
      %v655 = vld [vmem:[#allocation2 + $0x60] sm:$0xff]
      %v656 = vld [vmem:[#allocation2 + $0x68] sm:$0xff]
      %v657 = vld [vmem:[#allocation2 + $0x70] sm:$0xff]
      %v658 = vld [vmem:[#allocation2 + $0x78] sm:$0xff]
      %v659 = vld [vmem:[#allocation2 + $0x80] sm:$0xff]
      %v660 = vld [vmem:[#allocation2 + $0x88] sm:$0xff]
      %v661 = vld [vmem:[#allocation2 + $0x90] sm:$0xff]
      %v662 = vld [vmem:[#allocation2 + $0x98] sm:$0xff]
      %v663 = vld [vmem:[#allocation2 + $0xa0] sm:$0xff]
      %v664 = vld [vmem:[#allocation2 + $0xa8] sm:$0xff]
      %v665 = vld [vmem:[#allocation2 + $0xb0] sm:$0xff]
      %v666 = vld [vmem:[#allocation2 + $0xb8] sm:$0xff]
      %v667 = vld [vmem:[#allocation2 + $0xc0] sm:$0xff]
      %v668 = vld [vmem:[#allocation2 + $0xc8] sm:$0xff]
      %v669 = vld [vmem:[#allocation2 + $0xd0] sm:$0xff]
      %v670 = vld [vmem:[#allocation2 + $0xd8] sm:$0xff]
      %v671 = vld [vmem:[#allocation2 + $0xe0] sm:$0xff]
      %v672 = vld [vmem:[#allocation2 + $0xe8] sm:$0xff]
      %v673 = vld [vmem:[#allocation2 + $0xf0] sm:$0xff]
      %v674 = vld [vmem:[#allocation2 + $0xf8] sm:$0xff]
      %v675 = vpack.c.bf16 %v644, %v643
      %v676 = vpack.c.bf16 %v646, %v645
      %v677 = vpack.c.bf16 %v648, %v647
      %v678 = vpack.c.bf16 %v650, %v649
      %v679 = vpack.c.bf16 %v652, %v651
      %v680 = vpack.c.bf16 %v654, %v653
      %v681 = vpack.c.bf16 %v656, %v655
      %v682 = vpack.c.bf16 %v658, %v657
      %v683 = vpack.c.bf16 %v660, %v659
      %v684 = vpack.c.bf16 %v662, %v661
      %v685 = vpack.c.bf16 %v664, %v663
      %v686 = vpack.c.bf16 %v666, %v665
      %v687 = vpack.c.bf16 %v668, %v667
      %v688 = vpack.c.bf16 %v670, %v669
      %v689 = vpack.c.bf16 %v672, %v671
      %v690 = vpack.c.bf16 %v674, %v673
      %v707 = vunpack.c.l.b16 %v675
      %v708 = vunpack.c.h.b16 %v675
      %v709 = vunpack.c.l.b16 %v676
      %v710 = vunpack.c.h.b16 %v676
      %v711 = vunpack.c.l.b16 %v677
      %v712 = vunpack.c.h.b16 %v677
      %v713 = vunpack.c.l.b16 %v678
      %v714 = vunpack.c.h.b16 %v678
      %v715 = vunpack.c.l.b16 %v679
      %v716 = vunpack.c.h.b16 %v679
      %v717 = vunpack.c.l.b16 %v680
      %v718 = vunpack.c.h.b16 %v680
      %v719 = vunpack.c.l.b16 %v681
      %v720 = vunpack.c.h.b16 %v681
      %v721 = vunpack.c.l.b16 %v682
      %v722 = vunpack.c.h.b16 %v682
      %v723 = vunpack.c.l.b16 %v683
      %v724 = vunpack.c.h.b16 %v683
      %v725 = vunpack.c.l.b16 %v684
      %v726 = vunpack.c.h.b16 %v684
      %v727 = vunpack.c.l.b16 %v685
      %v728 = vunpack.c.h.b16 %v685
      %v729 = vunpack.c.l.b16 %v686
      %v730 = vunpack.c.h.b16 %v686
      %v731 = vunpack.c.l.b16 %v687
      %v732 = vunpack.c.h.b16 %v687
      %v733 = vunpack.c.l.b16 %v688
      %v734 = vunpack.c.h.b16 %v688
      %v735 = vunpack.c.l.b16 %v689
      %v736 = vunpack.c.h.b16 %v689
      %v737 = vunpack.c.l.b16 %v690
      %v738 = vunpack.c.h.b16 %v690
      %v739 = vpack.c.b16 %v707, %v707
      %v740 = vpack.c.b16 %v708, %v708
      %v741 = vpack.c.b16 %v709, %v709
      %v742 = vpack.c.b16 %v710, %v710
      %v743 = vpack.c.b16 %v711, %v711
      %v744 = vpack.c.b16 %v712, %v712
      %v745 = vpack.c.b16 %v713, %v713
      %v746 = vpack.c.b16 %v714, %v714
      %v747 = vpack.c.b16 %v715, %v715
      %v748 = vpack.c.b16 %v716, %v716
      %v749 = vpack.c.b16 %v717, %v717
      %v750 = vpack.c.b16 %v718, %v718
      %v751 = vpack.c.b16 %v719, %v719
      %v752 = vpack.c.b16 %v720, %v720
      %v753 = vpack.c.b16 %v721, %v721
      %v754 = vpack.c.b16 %v722, %v722
      %v755 = vpack.c.b16 %v723, %v723
      %v756 = vpack.c.b16 %v724, %v724
      %v757 = vpack.c.b16 %v725, %v725
      %v758 = vpack.c.b16 %v726, %v726
      %v759 = vpack.c.b16 %v727, %v727
      %v760 = vpack.c.b16 %v728, %v728
      %v761 = vpack.c.b16 %v729, %v729
      %v762 = vpack.c.b16 %v730, %v730
      %v763 = vpack.c.b16 %v731, %v731
      %v764 = vpack.c.b16 %v732, %v732
      %v765 = vpack.c.b16 %v733, %v733
      %v766 = vpack.c.b16 %v734, %v734
      %v767 = vpack.c.b16 %v735, %v735
      %v768 = vpack.c.b16 %v736, %v736
      %v769 = vpack.c.b16 %v737, %v737
      %v770 = vpack.c.b16 %v738, %v738
      %803 = vst [vmem:[#allocation3] sm:$0xf] %v739
      %804 = vst [vmem:[#allocation3 + $0x4] sm:$0xf] %v740
      %805 = vst [vmem:[#allocation3 + $0x8] sm:$0xf] %v741
      %806 = vst [vmem:[#allocation3 + $0xc] sm:$0xf] %v742
      %807 = vst [vmem:[#allocation3 + $0x10] sm:$0xf] %v743
      %808 = vst [vmem:[#allocation3 + $0x14] sm:$0xf] %v744
      %809 = vst [vmem:[#allocation3 + $0x18] sm:$0xf] %v745
      %810 = vst [vmem:[#allocation3 + $0x1c] sm:$0xf] %v746
      %811 = vst [vmem:[#allocation3 + $0x20] sm:$0xf] %v747
      %812 = vst [vmem:[#allocation3 + $0x24] sm:$0xf] %v748
      %813 = vst [vmem:[#allocation3 + $0x28] sm:$0xf] %v749
      %814 = vst [vmem:[#allocation3 + $0x2c] sm:$0xf] %v750
      %815 = vst [vmem:[#allocation3 + $0x30] sm:$0xf] %v751
      %816 = vst [vmem:[#allocation3 + $0x34] sm:$0xf] %v752
      %817 = vst [vmem:[#allocation3 + $0x38] sm:$0xf] %v753
      %818 = vst [vmem:[#allocation3 + $0x3c] sm:$0xf] %v754
      %819 = vst [vmem:[#allocation3 + $0x40] sm:$0xf] %v755
      %820 = vst [vmem:[#allocation3 + $0x44] sm:$0xf] %v756
      %821 = vst [vmem:[#allocation3 + $0x48] sm:$0xf] %v757
      %822 = vst [vmem:[#allocation3 + $0x4c] sm:$0xf] %v758
      %823 = vst [vmem:[#allocation3 + $0x50] sm:$0xf] %v759
      %824 = vst [vmem:[#allocation3 + $0x54] sm:$0xf] %v760
      %825 = vst [vmem:[#allocation3 + $0x58] sm:$0xf] %v761
      %826 = vst [vmem:[#allocation3 + $0x5c] sm:$0xf] %v762
      %827 = vst [vmem:[#allocation3 + $0x60] sm:$0xf] %v763
      %828 = vst [vmem:[#allocation3 + $0x64] sm:$0xf] %v764
      %829 = vst [vmem:[#allocation3 + $0x68] sm:$0xf] %v765
      %830 = vst [vmem:[#allocation3 + $0x6c] sm:$0xf] %v766
      %831 = vst [vmem:[#allocation3 + $0x70] sm:$0xf] %v767
      %832 = vst [vmem:[#allocation3 + $0x74] sm:$0xf] %v768
      %833 = vst [vmem:[#allocation3 + $0x78] sm:$0xf] %v769
      %834 = vst [vmem:[#allocation3 + $0x7c] sm:$0xf] %v770
      %v835 = vld [vmem:[%s2] sm:$0xff]
      %v836 = vld [vmem:[%s2 + $0x8] sm:$0xff]
      %v837 = vld [vmem:[%s2 + $0x10] sm:$0xff]
      %v838 = vld [vmem:[%s2 + $0x18] sm:$0xff]
      %v839 = vld [vmem:[%s2 + $0x20] sm:$0xff]
      %v840 = vld [vmem:[%s2 + $0x28] sm:$0xff]
      %v841 = vld [vmem:[%s2 + $0x30] sm:$0xff]
      %v842 = vld [vmem:[%s2 + $0x38] sm:$0xff]
      %v843 = vld [vmem:[%s2 + $0x40] sm:$0xff]
      %v844 = vld [vmem:[%s2 + $0x48] sm:$0xff]
      %v845 = vld [vmem:[%s2 + $0x50] sm:$0xff]
      %v846 = vld [vmem:[%s2 + $0x58] sm:$0xff]
      %v847 = vld [vmem:[%s2 + $0x60] sm:$0xff]
      %v848 = vld [vmem:[%s2 + $0x68] sm:$0xff]
      %v849 = vld [vmem:[%s2 + $0x70] sm:$0xff]
      %v850 = vld [vmem:[%s2 + $0x78] sm:$0xff]
      %v851 = vld [vmem:[%s2 + $0x80] sm:$0xff]
      %v852 = vld [vmem:[%s2 + $0x88] sm:$0xff]
      %v853 = vld [vmem:[%s2 + $0x90] sm:$0xff]
      %v854 = vld [vmem:[%s2 + $0x98] sm:$0xff]
      %v855 = vld [vmem:[%s2 + $0xa0] sm:$0xff]
      %v856 = vld [vmem:[%s2 + $0xa8] sm:$0xff]
      %v857 = vld [vmem:[%s2 + $0xb0] sm:$0xff]
      %v858 = vld [vmem:[%s2 + $0xb8] sm:$0xff]
      %v859 = vld [vmem:[%s2 + $0xc0] sm:$0xff]
      %v860 = vld [vmem:[%s2 + $0xc8] sm:$0xff]
      %v861 = vld [vmem:[%s2 + $0xd0] sm:$0xff]
      %v862 = vld [vmem:[%s2 + $0xd8] sm:$0xff]
      %v863 = vld [vmem:[%s2 + $0xe0] sm:$0xff]
      %v864 = vld [vmem:[%s2 + $0xe8] sm:$0xff]
      %v865 = vld [vmem:[%s2 + $0xf0] sm:$0xff]
      %v866 = vld [vmem:[%s2 + $0xf8] sm:$0xff]
      %v867 = vld [vmem:[#allocation2] sm:$0xff]
      %v868 = vld [vmem:[#allocation2 + $0x8] sm:$0xff]
      %v869 = vld [vmem:[#allocation2 + $0x10] sm:$0xff]
      %v870 = vld [vmem:[#allocation2 + $0x18] sm:$0xff]
      %v871 = vld [vmem:[#allocation2 + $0x20] sm:$0xff]
      %v872 = vld [vmem:[#allocation2 + $0x28] sm:$0xff]
      %v873 = vld [vmem:[#allocation2 + $0x30] sm:$0xff]
      %v874 = vld [vmem:[#allocation2 + $0x38] sm:$0xff]
      %v875 = vld [vmem:[#allocation2 + $0x40] sm:$0xff]
      %v876 = vld [vmem:[#allocation2 + $0x48] sm:$0xff]
      %v877 = vld [vmem:[#allocation2 + $0x50] sm:$0xff]
      %v878 = vld [vmem:[#allocation2 + $0x58] sm:$0xff]
      %v879 = vld [vmem:[#allocation2 + $0x60] sm:$0xff]
      %v880 = vld [vmem:[#allocation2 + $0x68] sm:$0xff]
      %v881 = vld [vmem:[#allocation2 + $0x70] sm:$0xff]
      %v882 = vld [vmem:[#allocation2 + $0x78] sm:$0xff]
      %v883 = vld [vmem:[#allocation2 + $0x80] sm:$0xff]
      %v884 = vld [vmem:[#allocation2 + $0x88] sm:$0xff]
      %v885 = vld [vmem:[#allocation2 + $0x90] sm:$0xff]
      %v886 = vld [vmem:[#allocation2 + $0x98] sm:$0xff]
      %v887 = vld [vmem:[#allocation2 + $0xa0] sm:$0xff]
      %v888 = vld [vmem:[#allocation2 + $0xa8] sm:$0xff]
      %v889 = vld [vmem:[#allocation2 + $0xb0] sm:$0xff]
      %v890 = vld [vmem:[#allocation2 + $0xb8] sm:$0xff]
      %v891 = vld [vmem:[#allocation2 + $0xc0] sm:$0xff]
      %v892 = vld [vmem:[#allocation2 + $0xc8] sm:$0xff]
      %v893 = vld [vmem:[#allocation2 + $0xd0] sm:$0xff]
      %v894 = vld [vmem:[#allocation2 + $0xd8] sm:$0xff]
      %v895 = vld [vmem:[#allocation2 + $0xe0] sm:$0xff]
      %v896 = vld [vmem:[#allocation2 + $0xe8] sm:$0xff]
      %v897 = vld [vmem:[#allocation2 + $0xf0] sm:$0xff]
      %v898 = vld [vmem:[#allocation2 + $0xf8] sm:$0xff]
      %v899 = vadd.f32 %v835, %v867
      %v900 = vadd.f32 %v836, %v868
      %v901 = vadd.f32 %v837, %v869
      %v902 = vadd.f32 %v838, %v870
      %v903 = vadd.f32 %v839, %v871
      %v904 = vadd.f32 %v840, %v872
      %v905 = vadd.f32 %v841, %v873
      %v906 = vadd.f32 %v842, %v874
      %v907 = vadd.f32 %v843, %v875
      %v908 = vadd.f32 %v844, %v876
      %v909 = vadd.f32 %v845, %v877
      %v910 = vadd.f32 %v846, %v878
      %v911 = vadd.f32 %v847, %v879
      %v912 = vadd.f32 %v848, %v880
      %v913 = vadd.f32 %v849, %v881
      %v914 = vadd.f32 %v850, %v882
      %v915 = vadd.f32 %v851, %v883
      %v916 = vadd.f32 %v852, %v884
      %v917 = vadd.f32 %v853, %v885
      %v918 = vadd.f32 %v854, %v886
      %v919 = vadd.f32 %v855, %v887
      %v920 = vadd.f32 %v856, %v888
      %v921 = vadd.f32 %v857, %v889
      %v922 = vadd.f32 %v858, %v890
      %v923 = vadd.f32 %v859, %v891
      %v924 = vadd.f32 %v860, %v892
      %v925 = vadd.f32 %v861, %v893
      %v926 = vadd.f32 %v862, %v894
      %v927 = vadd.f32 %v863, %v895
      %v928 = vadd.f32 %v864, %v896
      %v929 = vadd.f32 %v865, %v897
      %v930 = vadd.f32 %v866, %v898
      %931 = vst [vmem:[%s4] sm:$0xff] %v899
      %932 = vst [vmem:[%s4 + $0x8] sm:$0xff] %v900
      %933 = vst [vmem:[%s4 + $0x10] sm:$0xff] %v901
      %934 = vst [vmem:[%s4 + $0x18] sm:$0xff] %v902
      %935 = vst [vmem:[%s4 + $0x20] sm:$0xff] %v903
      %936 = vst [vmem:[%s4 + $0x28] sm:$0xff] %v904
      %937 = vst [vmem:[%s4 + $0x30] sm:$0xff] %v905
      %938 = vst [vmem:[%s4 + $0x38] sm:$0xff] %v906
      %939 = vst [vmem:[%s4 + $0x40] sm:$0xff] %v907
      %940 = vst [vmem:[%s4 + $0x48] sm:$0xff] %v908
      %941 = vst [vmem:[%s4 + $0x50] sm:$0xff] %v909
      %942 = vst [vmem:[%s4 + $0x58] sm:$0xff] %v910
      %943 = vst [vmem:[%s4 + $0x60] sm:$0xff] %v911
      %944 = vst [vmem:[%s4 + $0x68] sm:$0xff] %v912
      %945 = vst [vmem:[%s4 + $0x70] sm:$0xff] %v913
      %946 = vst [vmem:[%s4 + $0x78] sm:$0xff] %v914
      %947 = vst [vmem:[%s4 + $0x80] sm:$0xff] %v915
      %948 = vst [vmem:[%s4 + $0x88] sm:$0xff] %v916
      %949 = vst [vmem:[%s4 + $0x90] sm:$0xff] %v917
      %950 = vst [vmem:[%s4 + $0x98] sm:$0xff] %v918
      %951 = vst [vmem:[%s4 + $0xa0] sm:$0xff] %v919
      %952 = vst [vmem:[%s4 + $0xa8] sm:$0xff] %v920
      %953 = vst [vmem:[%s4 + $0xb0] sm:$0xff] %v921
      %954 = vst [vmem:[%s4 + $0xb8] sm:$0xff] %v922
      %955 = vst [vmem:[%s4 + $0xc0] sm:$0xff] %v923
      %956 = vst [vmem:[%s4 + $0xc8] sm:$0xff] %v924
      %957 = vst [vmem:[%s4 + $0xd0] sm:$0xff] %v925
      %958 = vst [vmem:[%s4 + $0xd8] sm:$0xff] %v926
      %959 = vst [vmem:[%s4 + $0xe0] sm:$0xff] %v927
      %960 = vst [vmem:[%s4 + $0xe8] sm:$0xff] %v928
      %961 = vst [vmem:[%s4 + $0xf0] sm:$0xff] %v929
      %962 = vst [vmem:[%s4 + $0xf8] sm:$0xff] %v930
    $region25: #{lightgcn_forward.4} parent=1 // pred_fallthru
      _
    // Predicated region
    $region26: #{lightgcn_forward.4} parent=1 // pred_check
      _
    $region27: #{lightgcn_forward.4} parent=1 // pred_check_branch
      %964 = sbr.rel (0) target = $region29
    $region28: #{lightgcn_forward.4} parent=1 // pred_region
      %s966 = ssub.s32 2048, 2048
      %967 = vsyncadd [#allocation4], %s966
      %s968 = sshll.u32 [#allocation3], 4
      %s969 = int_to_ptr.vmem [resolvable:$true] %s968
      %974 = dma.vmem_to_hbm [thread:$0]  %s969, 2048, %s3, [#allocation4], 64, 64, 4
    $region29: #{lightgcn_forward.4} parent=1 // pred_fallthru
      _
    // Predicated region
    $region30: #{lightgcn_forward.4} parent=1 // pred_check
      _
    $region31: #{lightgcn_forward.4} parent=1 // pred_check_branch
      %976 = sbr.rel (0) target = $region33
    $region32: #{lightgcn_forward.4} parent=1 // pred_region
      _
    $region33: #{lightgcn_forward.4} parent=1 // pred_fallthru
      _
    // Predicated region
    $region34: #{lightgcn_forward.4} parent=1 // pred_check
      _
    $region35: #{lightgcn_forward.4} parent=1 // pred_check_branch
      %978 = sbr.rel (0) target = $region37
    $region36: #{lightgcn_forward.4} parent=1 // pred_region
      %979 = dma.done [#allocation4], 2048
    $region37: #{lightgcn_forward.4} parent=1 // pred_fallthru
      _
    // Predicated region
    $region38: #{lightgcn_forward.4} parent=1 // pred_check
      _
    $region39: #{lightgcn_forward.4} parent=1 // pred_check_branch
      %981 = sbr.rel (0) target = $region41
    $region40: #{lightgcn_forward.4} parent=1 // pred_region
      _
    $region41: #{lightgcn_forward.4} parent=1 // pred_fallthru
      _
    %982 = vsyncpa [#allocation4], 1

// kernel: lightgcn_forward.3
$region0: #{lightgcn_forward.3}
  #allocation0 [shape = 'u32[]', space=smem, size = 0x4, offset = 0x4, fixed_abs, tag = 'smem constant byte address 0x4 - core index']
  #allocation1 [shape = 'u32[144,128]{1,0:T(1,128)}', space=vmem, size = 0x12000, scoped, tag = 'internal scratch']
  #allocation2 [shape = 'f32[256,128]{1,0:T(8,128)}', space=vmem, size = 0x20000, scoped, tag = 'scratch operand']
  %s0 = inlined_call_operand.vmem [shape: bf16[256,256], index: 0, kind: input, shape index: {}]
  %s1 = inlined_call_operand.vmem [shape: bf16[256,128], index: 1, kind: input, shape index: {}]
  %s2 = inlined_call_operand.vmem [shape: f32[256,128], index: 2, kind: input, shape index: {}, may-alias: {2,4}]
  %s3 = inlined_call_operand.vmem [shape: bf16[256,128], index: 3, kind: output, shape index: {0}]
  %s4 = inlined_call_operand.vmem [shape: f32[256,128], index: 4, kind: output, shape index: {1}, may-alias: {2,4}]
  %5 = xla_tuple %s3, %s4
  %s6 = sld [smem:[#allocation0]]
  $region42: #{lightgcn_forward.3} parent=0
    _
  %s8 = ssub.s32 1, %s6
  %s9 = scalar_select 0, %s8, %s6
  // Predicated region
  $region2: #{lightgcn_forward.3} parent=0 // pred_check
    _
  $region3: #{lightgcn_forward.3} parent=0 // pred_check_branch
    %11 = sbr.rel (0) target = $region5
  $region4: #{lightgcn_forward.3} parent=0 // pred_region
    _
  $region5: #{lightgcn_forward.3} parent=0 // pred_fallthru
    _
  // Predicated region
  $region6: #{lightgcn_forward.3} parent=0 // pred_check
    _
  $region7: #{lightgcn_forward.3} parent=0 // pred_check_branch
    %13 = sbr.rel (0) target = $region9
  $region8: #{lightgcn_forward.3} parent=0 // pred_region
    _
  $region9: #{lightgcn_forward.3} parent=0 // pred_fallthru
    _
  // Predicated region
  $region10: #{lightgcn_forward.3} parent=0 // pred_check
    _
  $region11: #{lightgcn_forward.3} parent=0 // pred_check_branch
    %15 = sbr.rel (0) target = $region13
  $region12: #{lightgcn_forward.3} parent=0 // pred_region
    _
  $region13: #{lightgcn_forward.3} parent=0 // pred_fallthru
    _
  %s17 = smul.u32 0, 256
  %s18 = sshra.s32 %s17, 3
  %s19 = sand.u32 %s17, 7
  %s20 = smul.addr %s18, 4
  %s21 = scalar_lea.vmem %s1, %s20
  %v22 = vld [vmem:[%s21] sm:$0xf]
  %v23 = vld [vmem:[%s21 + $0x4] sm:$0xf]
  %v24 = vld [vmem:[%s21 + $0x8] sm:$0xf]
  %v25 = vld [vmem:[%s21 + $0xc] sm:$0xf]
  %v26 = vld [vmem:[%s21 + $0x10] sm:$0xf]
  %v27 = vld [vmem:[%s21 + $0x14] sm:$0xf]
  %v28 = vld [vmem:[%s21 + $0x18] sm:$0xf]
  %v29 = vld [vmem:[%s21 + $0x1c] sm:$0xf]
  %v30 = vld [vmem:[%s21 + $0x20] sm:$0xf]
  %v31 = vld [vmem:[%s21 + $0x24] sm:$0xf]
  %v32 = vld [vmem:[%s21 + $0x28] sm:$0xf]
  %v33 = vld [vmem:[%s21 + $0x2c] sm:$0xf]
  %v34 = vld [vmem:[%s21 + $0x30] sm:$0xf]
  %v35 = vld [vmem:[%s21 + $0x34] sm:$0xf]
  %v36 = vld [vmem:[%s21 + $0x38] sm:$0xf]
  %v37 = vld [vmem:[%s21 + $0x3c] sm:$0xf]
  %v38 = vld [vmem:[%s21 + $0x40] sm:$0xf]
  %v39 = vld [vmem:[%s21 + $0x44] sm:$0xf]
  %v40 = vld [vmem:[%s21 + $0x48] sm:$0xf]
  %v41 = vld [vmem:[%s21 + $0x4c] sm:$0xf]
  %v42 = vld [vmem:[%s21 + $0x50] sm:$0xf]
  %v43 = vld [vmem:[%s21 + $0x54] sm:$0xf]
  %v44 = vld [vmem:[%s21 + $0x58] sm:$0xf]
  %v45 = vld [vmem:[%s21 + $0x5c] sm:$0xf]
  %v46 = vld [vmem:[%s21 + $0x60] sm:$0xf]
  %v47 = vld [vmem:[%s21 + $0x64] sm:$0xf]
  %v48 = vld [vmem:[%s21 + $0x68] sm:$0xf]
  %v49 = vld [vmem:[%s21 + $0x6c] sm:$0xf]
  %v50 = vld [vmem:[%s21 + $0x70] sm:$0xf]
  %v51 = vld [vmem:[%s21 + $0x74] sm:$0xf]
  %v52 = vld [vmem:[%s21 + $0x78] sm:$0xf]
  %v53 = vld [vmem:[%s21 + $0x7c] sm:$0xf]
  %v54 = vld [vmem:[%s0] sm:$0xff]
  %v55 = vld [vmem:[%s0 + $0x8] sm:$0xff]
  %v56 = vld [vmem:[%s0 + $0x10] sm:$0xff]
  %v57 = vld [vmem:[%s0 + $0x18] sm:$0xff]
  %v58 = vld [vmem:[%s0 + $0x20] sm:$0xff]
  %v59 = vld [vmem:[%s0 + $0x28] sm:$0xff]
  %v60 = vld [vmem:[%s0 + $0x30] sm:$0xff]
  %v61 = vld [vmem:[%s0 + $0x38] sm:$0xff]
  %v62 = vld [vmem:[%s0 + $0x40] sm:$0xff]
  %v63 = vld [vmem:[%s0 + $0x48] sm:$0xff]
  %v64 = vld [vmem:[%s0 + $0x50] sm:$0xff]
  %v65 = vld [vmem:[%s0 + $0x58] sm:$0xff]
  %v66 = vld [vmem:[%s0 + $0x60] sm:$0xff]
  %v67 = vld [vmem:[%s0 + $0x68] sm:$0xff]
  %v68 = vld [vmem:[%s0 + $0x70] sm:$0xff]
  %v69 = vld [vmem:[%s0 + $0x78] sm:$0xff]
  %v70 = vld [vmem:[%s0 + $0x80] sm:$0xff]
  %v71 = vld [vmem:[%s0 + $0x88] sm:$0xff]
  %v72 = vld [vmem:[%s0 + $0x90] sm:$0xff]
  %v73 = vld [vmem:[%s0 + $0x98] sm:$0xff]
  %v74 = vld [vmem:[%s0 + $0xa0] sm:$0xff]
  %v75 = vld [vmem:[%s0 + $0xa8] sm:$0xff]
  %v76 = vld [vmem:[%s0 + $0xb0] sm:$0xff]
  %v77 = vld [vmem:[%s0 + $0xb8] sm:$0xff]
  %v78 = vld [vmem:[%s0 + $0xc0] sm:$0xff]
  %v79 = vld [vmem:[%s0 + $0xc8] sm:$0xff]
  %v80 = vld [vmem:[%s0 + $0xd0] sm:$0xff]
  %v81 = vld [vmem:[%s0 + $0xd8] sm:$0xff]
  %v82 = vld [vmem:[%s0 + $0xe0] sm:$0xff]
  %v83 = vld [vmem:[%s0 + $0xe8] sm:$0xff]
  %v84 = vld [vmem:[%s0 + $0xf0] sm:$0xff]
  %v85 = vld [vmem:[%s0 + $0xf8] sm:$0xff]
  %v118 = vunpack.c.l.b16 %v54
  %v119 = vunpack.c.h.b16 %v54
  %v120 = vunpack.c.l.b16 %v55
  %v121 = vunpack.c.h.b16 %v55
  %v122 = vunpack.c.l.b16 %v56
  %v123 = vunpack.c.h.b16 %v56
  %v124 = vunpack.c.l.b16 %v57
  %v125 = vunpack.c.h.b16 %v57
  %v126 = vunpack.c.l.b16 %v58
  %v127 = vunpack.c.h.b16 %v58
  %v128 = vunpack.c.l.b16 %v59
  %v129 = vunpack.c.h.b16 %v59
  %v130 = vunpack.c.l.b16 %v60
  %v131 = vunpack.c.h.b16 %v60
  %v132 = vunpack.c.l.b16 %v61
  %v133 = vunpack.c.h.b16 %v61
  %v134 = vunpack.c.l.b16 %v62
  %v135 = vunpack.c.h.b16 %v62
  %v136 = vunpack.c.l.b16 %v63
  %v137 = vunpack.c.h.b16 %v63
  %v138 = vunpack.c.l.b16 %v64
  %v139 = vunpack.c.h.b16 %v64
  %v140 = vunpack.c.l.b16 %v65
  %v141 = vunpack.c.h.b16 %v65
  %v142 = vunpack.c.l.b16 %v66
  %v143 = vunpack.c.h.b16 %v66
  %v144 = vunpack.c.l.b16 %v67
  %v145 = vunpack.c.h.b16 %v67
  %v146 = vunpack.c.l.b16 %v68
  %v147 = vunpack.c.h.b16 %v68
  %v148 = vunpack.c.l.b16 %v69
  %v149 = vunpack.c.h.b16 %v69
  %v150 = vunpack.c.l.b16 %v70
  %v151 = vunpack.c.h.b16 %v70
  %v152 = vunpack.c.l.b16 %v71
  %v153 = vunpack.c.h.b16 %v71
  %v154 = vunpack.c.l.b16 %v72
  %v155 = vunpack.c.h.b16 %v72
  %v156 = vunpack.c.l.b16 %v73
  %v157 = vunpack.c.h.b16 %v73
  %v158 = vunpack.c.l.b16 %v74
  %v159 = vunpack.c.h.b16 %v74
  %v160 = vunpack.c.l.b16 %v75
  %v161 = vunpack.c.h.b16 %v75
  %v162 = vunpack.c.l.b16 %v76
  %v163 = vunpack.c.h.b16 %v76
  %v164 = vunpack.c.l.b16 %v77
  %v165 = vunpack.c.h.b16 %v77
  %v166 = vunpack.c.l.b16 %v78
  %v167 = vunpack.c.h.b16 %v78
  %v168 = vunpack.c.l.b16 %v79
  %v169 = vunpack.c.h.b16 %v79
  %v170 = vunpack.c.l.b16 %v80
  %v171 = vunpack.c.h.b16 %v80
  %v172 = vunpack.c.l.b16 %v81
  %v173 = vunpack.c.h.b16 %v81
  %v174 = vunpack.c.l.b16 %v82
  %v175 = vunpack.c.h.b16 %v82
  %v176 = vunpack.c.l.b16 %v83
  %v177 = vunpack.c.h.b16 %v83
  %v178 = vunpack.c.l.b16 %v84
  %v179 = vunpack.c.h.b16 %v84
  %v180 = vunpack.c.l.b16 %v85
  %v181 = vunpack.c.h.b16 %v85
  %v182 = vpack.c.b16 %v120, %v118
  %v183 = vpack.c.b16 %v121, %v119
  %v184 = vpack.c.b16 %v124, %v122
  %v185 = vpack.c.b16 %v125, %v123
  %v186 = vpack.c.b16 %v128, %v126
  %v187 = vpack.c.b16 %v129, %v127
  %v188 = vpack.c.b16 %v132, %v130
  %v189 = vpack.c.b16 %v133, %v131
  %v190 = vpack.c.b16 %v136, %v134
  %v191 = vpack.c.b16 %v137, %v135
  %v192 = vpack.c.b16 %v140, %v138
  %v193 = vpack.c.b16 %v141, %v139
  %v194 = vpack.c.b16 %v144, %v142
  %v195 = vpack.c.b16 %v145, %v143
  %v196 = vpack.c.b16 %v148, %v146
  %v197 = vpack.c.b16 %v149, %v147
  %v198 = vpack.c.b16 %v152, %v150
  %v199 = vpack.c.b16 %v153, %v151
  %v200 = vpack.c.b16 %v156, %v154
  %v201 = vpack.c.b16 %v157, %v155
  %v202 = vpack.c.b16 %v160, %v158
  %v203 = vpack.c.b16 %v161, %v159
  %v204 = vpack.c.b16 %v164, %v162
  %v205 = vpack.c.b16 %v165, %v163
  %v206 = vpack.c.b16 %v168, %v166
  %v207 = vpack.c.b16 %v169, %v167
  %v208 = vpack.c.b16 %v172, %v170
  %v209 = vpack.c.b16 %v173, %v171
  %v210 = vpack.c.b16 %v176, %v174
  %v211 = vpack.c.b16 %v177, %v175
  %v212 = vpack.c.b16 %v180, %v178
  %v213 = vpack.c.b16 %v181, %v179
  %v278 = vunpack.c.l.b16 %v22
  %v279 = vunpack.c.l.b16 %v23
  %v280 = vunpack.c.l.b16 %v24
  %v281 = vunpack.c.l.b16 %v25
  %v282 = vunpack.c.l.b16 %v26
  %v283 = vunpack.c.l.b16 %v27
  %v284 = vunpack.c.l.b16 %v28
  %v285 = vunpack.c.l.b16 %v29
  %v286 = vunpack.c.l.b16 %v30
  %v287 = vunpack.c.l.b16 %v31
  %v288 = vunpack.c.l.b16 %v32
  %v289 = vunpack.c.l.b16 %v33
  %v290 = vunpack.c.l.b16 %v34
  %v291 = vunpack.c.l.b16 %v35
  %v292 = vunpack.c.l.b16 %v36
  %v293 = vunpack.c.l.b16 %v37
  %v294 = vunpack.c.l.b16 %v38
  %v295 = vunpack.c.l.b16 %v39
  %v296 = vunpack.c.l.b16 %v40
  %v297 = vunpack.c.l.b16 %v41
  %v298 = vunpack.c.l.b16 %v42
  %v299 = vunpack.c.l.b16 %v43
  %v300 = vunpack.c.l.b16 %v44
  %v301 = vunpack.c.l.b16 %v45
  %v302 = vunpack.c.l.b16 %v46
  %v303 = vunpack.c.l.b16 %v47
  %v304 = vunpack.c.l.b16 %v48
  %v305 = vunpack.c.l.b16 %v49
  %v306 = vunpack.c.l.b16 %v50
  %v307 = vunpack.c.l.b16 %v51
  %v308 = vunpack.c.l.b16 %v52
  %v309 = vunpack.c.l.b16 %v53
  %v310 = vpack.c.b16 %v279, %v278
  %v311 = vpack.c.b16 %v281, %v280
  %v312 = vpack.c.b16 %v283, %v282
  %v313 = vpack.c.b16 %v285, %v284
  %v314 = vpack.c.b16 %v287, %v286
  %v315 = vpack.c.b16 %v289, %v288
  %v316 = vpack.c.b16 %v291, %v290
  %v317 = vpack.c.b16 %v293, %v292
  %v318 = vpack.c.b16 %v295, %v294
  %v319 = vpack.c.b16 %v297, %v296
  %v320 = vpack.c.b16 %v299, %v298
  %v321 = vpack.c.b16 %v301, %v300
  %v322 = vpack.c.b16 %v303, %v302
  %v323 = vpack.c.b16 %v305, %v304
  %v324 = vpack.c.b16 %v307, %v306
  %v325 = vpack.c.b16 %v309, %v308
  %342 = vmatprep.subr.bf16.mxu0 0
  %343 = vmatpush1.bf16.msra.mxu0 %v310
  %344 = vmatprep.subr.bf16.mxu0 0
  %345 = vmatpush1.bf16.msra.mxu0 %v311
  %346 = vmatprep.subr.bf16.mxu0 0
  %347 = vmatpush1.bf16.msra.mxu0 %v312
  %348 = vmatprep.subr.bf16.mxu0 0
  %349 = vmatpush1.bf16.msra.mxu0 %v313
  %350 = vmatprep.subr.bf16.mxu0 0
  %351 = vmatpush1.bf16.msra.mxu0 %v314
  %352 = vmatprep.subr.bf16.mxu0 0
  %353 = vmatpush1.bf16.msra.mxu0 %v315
  %354 = vmatprep.subr.bf16.mxu0 0
  %355 = vmatpush1.bf16.msra.mxu0 %v316
  %356 = vmatprep.subr.bf16.mxu0 0
  %357 = vmatpush1.bf16.msra.mxu0 %v317
  %358 = vmatprep.subr.bf16.mxu0 0
  %359 = vmatpush1.bf16.msra.mxu0 %v318
  %360 = vmatprep.subr.bf16.mxu0 0
  %361 = vmatpush1.bf16.msra.mxu0 %v319
  %362 = vmatprep.subr.bf16.mxu0 0
  %363 = vmatpush1.bf16.msra.mxu0 %v320
  %364 = vmatprep.subr.bf16.mxu0 0
  %365 = vmatpush1.bf16.msra.mxu0 %v321
  %366 = vmatprep.subr.bf16.mxu0 0
  %367 = vmatpush1.bf16.msra.mxu0 %v322
  %368 = vmatprep.subr.bf16.mxu0 0
  %369 = vmatpush1.bf16.msra.mxu0 %v323
  %370 = vmatprep.subr.bf16.mxu0 0
  %371 = vmatpush1.bf16.msra.mxu0 %v324
  %372 = vmatprep.subr.bf16.mxu0 0
  %373 = vmatpush1.bf16.msra.mxu0 %v325
  %374 = vmatprep.mubr.bf16.mxu0 %v183
  %375 = vmatmul.mubr.bf16.gmra.mrb[0].mxu0 %v182
  %v376 = vpop.f32.mrb[0].mxu0
  %v377 = vadd.f32 0.0, %v376
  %v378 = vpop.f32.mrb[0].mxu0
  %v379 = vpop.f32.mrb[0].mxu0
  %v380 = vadd.f32 0.0, %v379
  %v381 = vpop.f32.mrb[0].mxu0
  %382 = vmatprep.mubr.bf16.mxu0 %v185
  %383 = vmatmul.mubr.bf16.gmra.mrb[0].mxu0 %v184
  %v384 = vpop.f32.mrb[0].mxu0
  %v385 = vadd.f32 0.0, %v384
  %v386 = vpop.f32.mrb[0].mxu0
  %v387 = vpop.f32.mrb[0].mxu0
  %v388 = vadd.f32 0.0, %v387
  %v389 = vpop.f32.mrb[0].mxu0
  %390 = vmatprep.mubr.bf16.mxu0 %v187
  %391 = vmatmul.mubr.bf16.gmra.mrb[0].mxu0 %v186
  %v392 = vpop.f32.mrb[0].mxu0
  %v393 = vadd.f32 0.0, %v392
  %v394 = vpop.f32.mrb[0].mxu0
  %v395 = vpop.f32.mrb[0].mxu0
  %v396 = vadd.f32 0.0, %v395
  %v397 = vpop.f32.mrb[0].mxu0
  %398 = vmatprep.mubr.bf16.mxu0 %v189
  %399 = vmatmul.mubr.bf16.gmra.mrb[0].mxu0 %v188
  %v400 = vpop.f32.mrb[0].mxu0
  %v401 = vadd.f32 0.0, %v400
  %v402 = vpop.f32.mrb[0].mxu0
  %v403 = vpop.f32.mrb[0].mxu0
  %v404 = vadd.f32 0.0, %v403
  %v405 = vpop.f32.mrb[0].mxu0
  %406 = vmatprep.mubr.bf16.mxu0 %v191
  %407 = vmatmul.mubr.bf16.gmra.mrb[0].mxu0 %v190
  %v408 = vpop.f32.mrb[0].mxu0
  %v409 = vadd.f32 0.0, %v408
  %v410 = vpop.f32.mrb[0].mxu0
  %v411 = vpop.f32.mrb[0].mxu0
  %v412 = vadd.f32 0.0, %v411
  %v413 = vpop.f32.mrb[0].mxu0
  %414 = vmatprep.mubr.bf16.mxu0 %v193
  %415 = vmatmul.mubr.bf16.gmra.mrb[0].mxu0 %v192
  %v416 = vpop.f32.mrb[0].mxu0
  %v417 = vadd.f32 0.0, %v416
  %v418 = vpop.f32.mrb[0].mxu0
  %v419 = vpop.f32.mrb[0].mxu0
  %v420 = vadd.f32 0.0, %v419
  %v421 = vpop.f32.mrb[0].mxu0
  %422 = vmatprep.mubr.bf16.mxu0 %v195
  %423 = vmatmul.mubr.bf16.gmra.mrb[0].mxu0 %v194
  %v424 = vpop.f32.mrb[0].mxu0
  %v425 = vadd.f32 0.0, %v424
  %v426 = vpop.f32.mrb[0].mxu0
  %v427 = vpop.f32.mrb[0].mxu0
  %v428 = vadd.f32 0.0, %v427
  %v429 = vpop.f32.mrb[0].mxu0
  %430 = vmatprep.mubr.bf16.mxu0 %v197
  %431 = vmatmul.mubr.bf16.gmra.mrb[0].mxu0 %v196
  %v432 = vpop.f32.mrb[0].mxu0
  %v433 = vadd.f32 0.0, %v432
  %v434 = vpop.f32.mrb[0].mxu0
  %v435 = vpop.f32.mrb[0].mxu0
  %v436 = vadd.f32 0.0, %v435
  %v437 = vpop.f32.mrb[0].mxu0
  %438 = vmatprep.mubr.bf16.mxu0 %v199
  %439 = vmatmul.mubr.bf16.gmra.mrb[0].mxu0 %v198
  %v440 = vpop.f32.mrb[0].mxu0
  %v441 = vadd.f32 0.0, %v440
  %v442 = vpop.f32.mrb[0].mxu0
  %v443 = vpop.f32.mrb[0].mxu0
  %v444 = vadd.f32 0.0, %v443
  %v445 = vpop.f32.mrb[0].mxu0
  %446 = vmatprep.mubr.bf16.mxu0 %v201
  %447 = vmatmul.mubr.bf16.gmra.mrb[0].mxu0 %v200
  %v448 = vpop.f32.mrb[0].mxu0
  %v449 = vadd.f32 0.0, %v448
  %v450 = vpop.f32.mrb[0].mxu0
  %v451 = vpop.f32.mrb[0].mxu0
  %v452 = vadd.f32 0.0, %v451
  %v453 = vpop.f32.mrb[0].mxu0
  %454 = vmatprep.mubr.bf16.mxu0 %v203
  %455 = vmatmul.mubr.bf16.gmra.mrb[0].mxu0 %v202
  %v456 = vpop.f32.mrb[0].mxu0
  %v457 = vadd.f32 0.0, %v456
  %v458 = vpop.f32.mrb[0].mxu0
  %v459 = vpop.f32.mrb[0].mxu0
  %v460 = vadd.f32 0.0, %v459
  %v461 = vpop.f32.mrb[0].mxu0
  %462 = vmatprep.mubr.bf16.mxu0 %v205
  %463 = vmatmul.mubr.bf16.gmra.mrb[0].mxu0 %v204
  %v464 = vpop.f32.mrb[0].mxu0
  %v465 = vadd.f32 0.0, %v464
  %v466 = vpop.f32.mrb[0].mxu0
  %v467 = vpop.f32.mrb[0].mxu0
  %v468 = vadd.f32 0.0, %v467
  %v469 = vpop.f32.mrb[0].mxu0
  %470 = vmatprep.mubr.bf16.mxu0 %v207
  %471 = vmatmul.mubr.bf16.gmra.mrb[0].mxu0 %v206
  %v472 = vpop.f32.mrb[0].mxu0
  %v473 = vadd.f32 0.0, %v472
  %v474 = vpop.f32.mrb[0].mxu0
  %v475 = vpop.f32.mrb[0].mxu0
  %v476 = vadd.f32 0.0, %v475
  %v477 = vpop.f32.mrb[0].mxu0
  %478 = vmatprep.mubr.bf16.mxu0 %v209
  %479 = vmatmul.mubr.bf16.gmra.mrb[0].mxu0 %v208
  %v480 = vpop.f32.mrb[0].mxu0
  %v481 = vadd.f32 0.0, %v480
  %v482 = vpop.f32.mrb[0].mxu0
  %v483 = vpop.f32.mrb[0].mxu0
  %v484 = vadd.f32 0.0, %v483
  %v485 = vpop.f32.mrb[0].mxu0
  %486 = vmatprep.mubr.bf16.mxu0 %v211
  %487 = vmatmul.mubr.bf16.gmra.mrb[0].mxu0 %v210
  %v488 = vpop.f32.mrb[0].mxu0
  %v489 = vadd.f32 0.0, %v488
  %v490 = vpop.f32.mrb[0].mxu0
  %v491 = vpop.f32.mrb[0].mxu0
  %v492 = vadd.f32 0.0, %v491
  %v493 = vpop.f32.mrb[0].mxu0
  %494 = vmatprep.mubr.bf16.mxu0 %v213
  %495 = vmatmul.mubr.bf16.gmra.mrb[0].mxu0 %v212
  %v496 = vpop.f32.mrb[0].mxu0
  %v497 = vadd.f32 0.0, %v496
  %v498 = vpop.f32.mrb[0].mxu0
  %v499 = vpop.f32.mrb[0].mxu0
  %v500 = vadd.f32 0.0, %v499
  %v501 = vpop.f32.mrb[0].mxu0
  %502 = vdwg.mxu0
  %p503 = scmp.eq.s32.totalorder 0, 0
  // Predicated region
  $region14: #{lightgcn_forward.3} parent=0 // pred_check
    %p504 = pneg %p503
  $region15: #{lightgcn_forward.3} parent=0 // pred_check_branch
    %506 = sbr.rel (%p504) target = $region17
  $region16: #{lightgcn_forward.3} parent=0 // pred_region
    %507 = vst [vmem:[#allocation2] sm:$0xff] %v377
    %508 = vst [vmem:[#allocation2 + $0x8] sm:$0xff] %v380
    %509 = vst [vmem:[#allocation2 + $0x10] sm:$0xff] %v385
    %510 = vst [vmem:[#allocation2 + $0x18] sm:$0xff] %v388
    %511 = vst [vmem:[#allocation2 + $0x20] sm:$0xff] %v393
    %512 = vst [vmem:[#allocation2 + $0x28] sm:$0xff] %v396
    %513 = vst [vmem:[#allocation2 + $0x30] sm:$0xff] %v401
    %514 = vst [vmem:[#allocation2 + $0x38] sm:$0xff] %v404
    %515 = vst [vmem:[#allocation2 + $0x40] sm:$0xff] %v409
    %516 = vst [vmem:[#allocation2 + $0x48] sm:$0xff] %v412
    %517 = vst [vmem:[#allocation2 + $0x50] sm:$0xff] %v417
    %518 = vst [vmem:[#allocation2 + $0x58] sm:$0xff] %v420
    %519 = vst [vmem:[#allocation2 + $0x60] sm:$0xff] %v425
    %520 = vst [vmem:[#allocation2 + $0x68] sm:$0xff] %v428
    %521 = vst [vmem:[#allocation2 + $0x70] sm:$0xff] %v433
    %522 = vst [vmem:[#allocation2 + $0x78] sm:$0xff] %v436
    %523 = vst [vmem:[#allocation2 + $0x80] sm:$0xff] %v441
    %524 = vst [vmem:[#allocation2 + $0x88] sm:$0xff] %v444
    %525 = vst [vmem:[#allocation2 + $0x90] sm:$0xff] %v449
    %526 = vst [vmem:[#allocation2 + $0x98] sm:$0xff] %v452
    %527 = vst [vmem:[#allocation2 + $0xa0] sm:$0xff] %v457
    %528 = vst [vmem:[#allocation2 + $0xa8] sm:$0xff] %v460
    %529 = vst [vmem:[#allocation2 + $0xb0] sm:$0xff] %v465
    %530 = vst [vmem:[#allocation2 + $0xb8] sm:$0xff] %v468
    %531 = vst [vmem:[#allocation2 + $0xc0] sm:$0xff] %v473
    %532 = vst [vmem:[#allocation2 + $0xc8] sm:$0xff] %v476
    %533 = vst [vmem:[#allocation2 + $0xd0] sm:$0xff] %v481
    %534 = vst [vmem:[#allocation2 + $0xd8] sm:$0xff] %v484
    %535 = vst [vmem:[#allocation2 + $0xe0] sm:$0xff] %v489
    %536 = vst [vmem:[#allocation2 + $0xe8] sm:$0xff] %v492
    %537 = vst [vmem:[#allocation2 + $0xf0] sm:$0xff] %v497
    %538 = vst [vmem:[#allocation2 + $0xf8] sm:$0xff] %v500
  $region17: #{lightgcn_forward.3} parent=0 // pred_fallthru
    _
  %p539 = scmp.gt.s32.totalorder 0, 0
  // Predicated region
  $region18: #{lightgcn_forward.3} parent=0 // pred_check
    %p540 = pneg %p539
  $region19: #{lightgcn_forward.3} parent=0 // pred_check_branch
    %542 = sbr.rel (%p540) target = $region21
  $region20: #{lightgcn_forward.3} parent=0 // pred_region
    %v543 = vld [vmem:[#allocation2] sm:$0xff]
    %v544 = vld [vmem:[#allocation2 + $0x8] sm:$0xff]
    %v545 = vld [vmem:[#allocation2 + $0x10] sm:$0xff]
    %v546 = vld [vmem:[#allocation2 + $0x18] sm:$0xff]
    %v547 = vld [vmem:[#allocation2 + $0x20] sm:$0xff]
    %v548 = vld [vmem:[#allocation2 + $0x28] sm:$0xff]
    %v549 = vld [vmem:[#allocation2 + $0x30] sm:$0xff]
    %v550 = vld [vmem:[#allocation2 + $0x38] sm:$0xff]
    %v551 = vld [vmem:[#allocation2 + $0x40] sm:$0xff]
    %v552 = vld [vmem:[#allocation2 + $0x48] sm:$0xff]
    %v553 = vld [vmem:[#allocation2 + $0x50] sm:$0xff]
    %v554 = vld [vmem:[#allocation2 + $0x58] sm:$0xff]
    %v555 = vld [vmem:[#allocation2 + $0x60] sm:$0xff]
    %v556 = vld [vmem:[#allocation2 + $0x68] sm:$0xff]
    %v557 = vld [vmem:[#allocation2 + $0x70] sm:$0xff]
    %v558 = vld [vmem:[#allocation2 + $0x78] sm:$0xff]
    %v559 = vld [vmem:[#allocation2 + $0x80] sm:$0xff]
    %v560 = vld [vmem:[#allocation2 + $0x88] sm:$0xff]
    %v561 = vld [vmem:[#allocation2 + $0x90] sm:$0xff]
    %v562 = vld [vmem:[#allocation2 + $0x98] sm:$0xff]
    %v563 = vld [vmem:[#allocation2 + $0xa0] sm:$0xff]
    %v564 = vld [vmem:[#allocation2 + $0xa8] sm:$0xff]
    %v565 = vld [vmem:[#allocation2 + $0xb0] sm:$0xff]
    %v566 = vld [vmem:[#allocation2 + $0xb8] sm:$0xff]
    %v567 = vld [vmem:[#allocation2 + $0xc0] sm:$0xff]
    %v568 = vld [vmem:[#allocation2 + $0xc8] sm:$0xff]
    %v569 = vld [vmem:[#allocation2 + $0xd0] sm:$0xff]
    %v570 = vld [vmem:[#allocation2 + $0xd8] sm:$0xff]
    %v571 = vld [vmem:[#allocation2 + $0xe0] sm:$0xff]
    %v572 = vld [vmem:[#allocation2 + $0xe8] sm:$0xff]
    %v573 = vld [vmem:[#allocation2 + $0xf0] sm:$0xff]
    %v574 = vld [vmem:[#allocation2 + $0xf8] sm:$0xff]
    %v575 = vadd.f32 %v543, %v377
    %v576 = vadd.f32 %v544, %v380
    %v577 = vadd.f32 %v545, %v385
    %v578 = vadd.f32 %v546, %v388
    %v579 = vadd.f32 %v547, %v393
    %v580 = vadd.f32 %v548, %v396
    %v581 = vadd.f32 %v549, %v401
    %v582 = vadd.f32 %v550, %v404
    %v583 = vadd.f32 %v551, %v409
    %v584 = vadd.f32 %v552, %v412
    %v585 = vadd.f32 %v553, %v417
    %v586 = vadd.f32 %v554, %v420
    %v587 = vadd.f32 %v555, %v425
    %v588 = vadd.f32 %v556, %v428
    %v589 = vadd.f32 %v557, %v433
    %v590 = vadd.f32 %v558, %v436
    %v591 = vadd.f32 %v559, %v441
    %v592 = vadd.f32 %v560, %v444
    %v593 = vadd.f32 %v561, %v449
    %v594 = vadd.f32 %v562, %v452
    %v595 = vadd.f32 %v563, %v457
    %v596 = vadd.f32 %v564, %v460
    %v597 = vadd.f32 %v565, %v465
    %v598 = vadd.f32 %v566, %v468
    %v599 = vadd.f32 %v567, %v473
    %v600 = vadd.f32 %v568, %v476
    %v601 = vadd.f32 %v569, %v481
    %v602 = vadd.f32 %v570, %v484
    %v603 = vadd.f32 %v571, %v489
    %v604 = vadd.f32 %v572, %v492
    %v605 = vadd.f32 %v573, %v497
    %v606 = vadd.f32 %v574, %v500
    %607 = vst [vmem:[#allocation2] sm:$0xff] %v575
    %608 = vst [vmem:[#allocation2 + $0x8] sm:$0xff] %v576
    %609 = vst [vmem:[#allocation2 + $0x10] sm:$0xff] %v577
    %610 = vst [vmem:[#allocation2 + $0x18] sm:$0xff] %v578
    %611 = vst [vmem:[#allocation2 + $0x20] sm:$0xff] %v579
    %612 = vst [vmem:[#allocation2 + $0x28] sm:$0xff] %v580
    %613 = vst [vmem:[#allocation2 + $0x30] sm:$0xff] %v581
    %614 = vst [vmem:[#allocation2 + $0x38] sm:$0xff] %v582
    %615 = vst [vmem:[#allocation2 + $0x40] sm:$0xff] %v583
    %616 = vst [vmem:[#allocation2 + $0x48] sm:$0xff] %v584
    %617 = vst [vmem:[#allocation2 + $0x50] sm:$0xff] %v585
    %618 = vst [vmem:[#allocation2 + $0x58] sm:$0xff] %v586
    %619 = vst [vmem:[#allocation2 + $0x60] sm:$0xff] %v587
    %620 = vst [vmem:[#allocation2 + $0x68] sm:$0xff] %v588
    %621 = vst [vmem:[#allocation2 + $0x70] sm:$0xff] %v589
    %622 = vst [vmem:[#allocation2 + $0x78] sm:$0xff] %v590
    %623 = vst [vmem:[#allocation2 + $0x80] sm:$0xff] %v591
    %624 = vst [vmem:[#allocation2 + $0x88] sm:$0xff] %v592
    %625 = vst [vmem:[#allocation2 + $0x90] sm:$0xff] %v593
    %626 = vst [vmem:[#allocation2 + $0x98] sm:$0xff] %v594
    %627 = vst [vmem:[#allocation2 + $0xa0] sm:$0xff] %v595
    %628 = vst [vmem:[#allocation2 + $0xa8] sm:$0xff] %v596
    %629 = vst [vmem:[#allocation2 + $0xb0] sm:$0xff] %v597
    %630 = vst [vmem:[#allocation2 + $0xb8] sm:$0xff] %v598
    %631 = vst [vmem:[#allocation2 + $0xc0] sm:$0xff] %v599
    %632 = vst [vmem:[#allocation2 + $0xc8] sm:$0xff] %v600
    %633 = vst [vmem:[#allocation2 + $0xd0] sm:$0xff] %v601
    %634 = vst [vmem:[#allocation2 + $0xd8] sm:$0xff] %v602
    %635 = vst [vmem:[#allocation2 + $0xe0] sm:$0xff] %v603
    %636 = vst [vmem:[#allocation2 + $0xe8] sm:$0xff] %v604
    %637 = vst [vmem:[#allocation2 + $0xf0] sm:$0xff] %v605
    %638 = vst [vmem:[#allocation2 + $0xf8] sm:$0xff] %v606
  $region21: #{lightgcn_forward.3} parent=0 // pred_fallthru
    _
  // Predicated region
  $region22: #{lightgcn_forward.3} parent=0 // pred_check
    %p639 = pneg %p503
  $region23: #{lightgcn_forward.3} parent=0 // pred_check_branch
    %641 = sbr.rel (%p639) target = $region25
  $region24: #{lightgcn_forward.3} parent=0 // pred_region
    %v642 = vld [vmem:[#allocation2] sm:$0xff]
    %v643 = vld [vmem:[#allocation2 + $0x8] sm:$0xff]
    %v644 = vld [vmem:[#allocation2 + $0x10] sm:$0xff]
    %v645 = vld [vmem:[#allocation2 + $0x18] sm:$0xff]
    %v646 = vld [vmem:[#allocation2 + $0x20] sm:$0xff]
    %v647 = vld [vmem:[#allocation2 + $0x28] sm:$0xff]
    %v648 = vld [vmem:[#allocation2 + $0x30] sm:$0xff]
    %v649 = vld [vmem:[#allocation2 + $0x38] sm:$0xff]
    %v650 = vld [vmem:[#allocation2 + $0x40] sm:$0xff]
    %v651 = vld [vmem:[#allocation2 + $0x48] sm:$0xff]
    %v652 = vld [vmem:[#allocation2 + $0x50] sm:$0xff]
    %v653 = vld [vmem:[#allocation2 + $0x58] sm:$0xff]
    %v654 = vld [vmem:[#allocation2 + $0x60] sm:$0xff]
    %v655 = vld [vmem:[#allocation2 + $0x68] sm:$0xff]
    %v656 = vld [vmem:[#allocation2 + $0x70] sm:$0xff]
    %v657 = vld [vmem:[#allocation2 + $0x78] sm:$0xff]
    %v658 = vld [vmem:[#allocation2 + $0x80] sm:$0xff]
    %v659 = vld [vmem:[#allocation2 + $0x88] sm:$0xff]
    %v660 = vld [vmem:[#allocation2 + $0x90] sm:$0xff]
    %v661 = vld [vmem:[#allocation2 + $0x98] sm:$0xff]
    %v662 = vld [vmem:[#allocation2 + $0xa0] sm:$0xff]
    %v663 = vld [vmem:[#allocation2 + $0xa8] sm:$0xff]
    %v664 = vld [vmem:[#allocation2 + $0xb0] sm:$0xff]
    %v665 = vld [vmem:[#allocation2 + $0xb8] sm:$0xff]
    %v666 = vld [vmem:[#allocation2 + $0xc0] sm:$0xff]
    %v667 = vld [vmem:[#allocation2 + $0xc8] sm:$0xff]
    %v668 = vld [vmem:[#allocation2 + $0xd0] sm:$0xff]
    %v669 = vld [vmem:[#allocation2 + $0xd8] sm:$0xff]
    %v670 = vld [vmem:[#allocation2 + $0xe0] sm:$0xff]
    %v671 = vld [vmem:[#allocation2 + $0xe8] sm:$0xff]
    %v672 = vld [vmem:[#allocation2 + $0xf0] sm:$0xff]
    %v673 = vld [vmem:[#allocation2 + $0xf8] sm:$0xff]
    %v674 = vpack.c.bf16 %v643, %v642
    %v675 = vpack.c.bf16 %v645, %v644
    %v676 = vpack.c.bf16 %v647, %v646
    %v677 = vpack.c.bf16 %v649, %v648
    %v678 = vpack.c.bf16 %v651, %v650
    %v679 = vpack.c.bf16 %v653, %v652
    %v680 = vpack.c.bf16 %v655, %v654
    %v681 = vpack.c.bf16 %v657, %v656
    %v682 = vpack.c.bf16 %v659, %v658
    %v683 = vpack.c.bf16 %v661, %v660
    %v684 = vpack.c.bf16 %v663, %v662
    %v685 = vpack.c.bf16 %v665, %v664
    %v686 = vpack.c.bf16 %v667, %v666
    %v687 = vpack.c.bf16 %v669, %v668
    %v688 = vpack.c.bf16 %v671, %v670
    %v689 = vpack.c.bf16 %v673, %v672
    %v706 = vunpack.c.l.b16 %v674
    %v707 = vunpack.c.h.b16 %v674
    %v708 = vunpack.c.l.b16 %v675
    %v709 = vunpack.c.h.b16 %v675
    %v710 = vunpack.c.l.b16 %v676
    %v711 = vunpack.c.h.b16 %v676
    %v712 = vunpack.c.l.b16 %v677
    %v713 = vunpack.c.h.b16 %v677
    %v714 = vunpack.c.l.b16 %v678
    %v715 = vunpack.c.h.b16 %v678
    %v716 = vunpack.c.l.b16 %v679
    %v717 = vunpack.c.h.b16 %v679
    %v718 = vunpack.c.l.b16 %v680
    %v719 = vunpack.c.h.b16 %v680
    %v720 = vunpack.c.l.b16 %v681
    %v721 = vunpack.c.h.b16 %v681
    %v722 = vunpack.c.l.b16 %v682
    %v723 = vunpack.c.h.b16 %v682
    %v724 = vunpack.c.l.b16 %v683
    %v725 = vunpack.c.h.b16 %v683
    %v726 = vunpack.c.l.b16 %v684
    %v727 = vunpack.c.h.b16 %v684
    %v728 = vunpack.c.l.b16 %v685
    %v729 = vunpack.c.h.b16 %v685
    %v730 = vunpack.c.l.b16 %v686
    %v731 = vunpack.c.h.b16 %v686
    %v732 = vunpack.c.l.b16 %v687
    %v733 = vunpack.c.h.b16 %v687
    %v734 = vunpack.c.l.b16 %v688
    %v735 = vunpack.c.h.b16 %v688
    %v736 = vunpack.c.l.b16 %v689
    %v737 = vunpack.c.h.b16 %v689
    %v738 = vpack.c.b16 %v706, %v706
    %v739 = vpack.c.b16 %v707, %v707
    %v740 = vpack.c.b16 %v708, %v708
    %v741 = vpack.c.b16 %v709, %v709
    %v742 = vpack.c.b16 %v710, %v710
    %v743 = vpack.c.b16 %v711, %v711
    %v744 = vpack.c.b16 %v712, %v712
    %v745 = vpack.c.b16 %v713, %v713
    %v746 = vpack.c.b16 %v714, %v714
    %v747 = vpack.c.b16 %v715, %v715
    %v748 = vpack.c.b16 %v716, %v716
    %v749 = vpack.c.b16 %v717, %v717
    %v750 = vpack.c.b16 %v718, %v718
    %v751 = vpack.c.b16 %v719, %v719
    %v752 = vpack.c.b16 %v720, %v720
    %v753 = vpack.c.b16 %v721, %v721
    %v754 = vpack.c.b16 %v722, %v722
    %v755 = vpack.c.b16 %v723, %v723
    %v756 = vpack.c.b16 %v724, %v724
    %v757 = vpack.c.b16 %v725, %v725
    %v758 = vpack.c.b16 %v726, %v726
    %v759 = vpack.c.b16 %v727, %v727
    %v760 = vpack.c.b16 %v728, %v728
    %v761 = vpack.c.b16 %v729, %v729
    %v762 = vpack.c.b16 %v730, %v730
    %v763 = vpack.c.b16 %v731, %v731
    %v764 = vpack.c.b16 %v732, %v732
    %v765 = vpack.c.b16 %v733, %v733
    %v766 = vpack.c.b16 %v734, %v734
    %v767 = vpack.c.b16 %v735, %v735
    %v768 = vpack.c.b16 %v736, %v736
    %v769 = vpack.c.b16 %v737, %v737
    %802 = vst [vmem:[%s3] sm:$0xf] %v738
    %803 = vst [vmem:[%s3 + $0x4] sm:$0xf] %v739
    %804 = vst [vmem:[%s3 + $0x8] sm:$0xf] %v740
    %805 = vst [vmem:[%s3 + $0xc] sm:$0xf] %v741
    %806 = vst [vmem:[%s3 + $0x10] sm:$0xf] %v742
    %807 = vst [vmem:[%s3 + $0x14] sm:$0xf] %v743
    %808 = vst [vmem:[%s3 + $0x18] sm:$0xf] %v744
    %809 = vst [vmem:[%s3 + $0x1c] sm:$0xf] %v745
    %810 = vst [vmem:[%s3 + $0x20] sm:$0xf] %v746
    %811 = vst [vmem:[%s3 + $0x24] sm:$0xf] %v747
    %812 = vst [vmem:[%s3 + $0x28] sm:$0xf] %v748
    %813 = vst [vmem:[%s3 + $0x2c] sm:$0xf] %v749
    %814 = vst [vmem:[%s3 + $0x30] sm:$0xf] %v750
    %815 = vst [vmem:[%s3 + $0x34] sm:$0xf] %v751
    %816 = vst [vmem:[%s3 + $0x38] sm:$0xf] %v752
    %817 = vst [vmem:[%s3 + $0x3c] sm:$0xf] %v753
    %818 = vst [vmem:[%s3 + $0x40] sm:$0xf] %v754
    %819 = vst [vmem:[%s3 + $0x44] sm:$0xf] %v755
    %820 = vst [vmem:[%s3 + $0x48] sm:$0xf] %v756
    %821 = vst [vmem:[%s3 + $0x4c] sm:$0xf] %v757
    %822 = vst [vmem:[%s3 + $0x50] sm:$0xf] %v758
    %823 = vst [vmem:[%s3 + $0x54] sm:$0xf] %v759
    %824 = vst [vmem:[%s3 + $0x58] sm:$0xf] %v760
    %825 = vst [vmem:[%s3 + $0x5c] sm:$0xf] %v761
    %826 = vst [vmem:[%s3 + $0x60] sm:$0xf] %v762
    %827 = vst [vmem:[%s3 + $0x64] sm:$0xf] %v763
    %828 = vst [vmem:[%s3 + $0x68] sm:$0xf] %v764
    %829 = vst [vmem:[%s3 + $0x6c] sm:$0xf] %v765
    %830 = vst [vmem:[%s3 + $0x70] sm:$0xf] %v766
    %831 = vst [vmem:[%s3 + $0x74] sm:$0xf] %v767
    %832 = vst [vmem:[%s3 + $0x78] sm:$0xf] %v768
    %833 = vst [vmem:[%s3 + $0x7c] sm:$0xf] %v769
    %v834 = vld [vmem:[%s2] sm:$0xff]
    %v835 = vld [vmem:[%s2 + $0x8] sm:$0xff]
    %v836 = vld [vmem:[%s2 + $0x10] sm:$0xff]
    %v837 = vld [vmem:[%s2 + $0x18] sm:$0xff]
    %v838 = vld [vmem:[%s2 + $0x20] sm:$0xff]
    %v839 = vld [vmem:[%s2 + $0x28] sm:$0xff]
    %v840 = vld [vmem:[%s2 + $0x30] sm:$0xff]
    %v841 = vld [vmem:[%s2 + $0x38] sm:$0xff]
    %v842 = vld [vmem:[%s2 + $0x40] sm:$0xff]
    %v843 = vld [vmem:[%s2 + $0x48] sm:$0xff]
    %v844 = vld [vmem:[%s2 + $0x50] sm:$0xff]
    %v845 = vld [vmem:[%s2 + $0x58] sm:$0xff]
    %v846 = vld [vmem:[%s2 + $0x60] sm:$0xff]
    %v847 = vld [vmem:[%s2 + $0x68] sm:$0xff]
    %v848 = vld [vmem:[%s2 + $0x70] sm:$0xff]
    %v849 = vld [vmem:[%s2 + $0x78] sm:$0xff]
    %v850 = vld [vmem:[%s2 + $0x80] sm:$0xff]
    %v851 = vld [vmem:[%s2 + $0x88] sm:$0xff]
    %v852 = vld [vmem:[%s2 + $0x90] sm:$0xff]
    %v853 = vld [vmem:[%s2 + $0x98] sm:$0xff]
    %v854 = vld [vmem:[%s2 + $0xa0] sm:$0xff]
    %v855 = vld [vmem:[%s2 + $0xa8] sm:$0xff]
    %v856 = vld [vmem:[%s2 + $0xb0] sm:$0xff]
    %v857 = vld [vmem:[%s2 + $0xb8] sm:$0xff]
    %v858 = vld [vmem:[%s2 + $0xc0] sm:$0xff]
    %v859 = vld [vmem:[%s2 + $0xc8] sm:$0xff]
    %v860 = vld [vmem:[%s2 + $0xd0] sm:$0xff]
    %v861 = vld [vmem:[%s2 + $0xd8] sm:$0xff]
    %v862 = vld [vmem:[%s2 + $0xe0] sm:$0xff]
    %v863 = vld [vmem:[%s2 + $0xe8] sm:$0xff]
    %v864 = vld [vmem:[%s2 + $0xf0] sm:$0xff]
    %v865 = vld [vmem:[%s2 + $0xf8] sm:$0xff]
    %v866 = vld [vmem:[#allocation2] sm:$0xff]
    %v867 = vld [vmem:[#allocation2 + $0x8] sm:$0xff]
    %v868 = vld [vmem:[#allocation2 + $0x10] sm:$0xff]
    %v869 = vld [vmem:[#allocation2 + $0x18] sm:$0xff]
    %v870 = vld [vmem:[#allocation2 + $0x20] sm:$0xff]
    %v871 = vld [vmem:[#allocation2 + $0x28] sm:$0xff]
    %v872 = vld [vmem:[#allocation2 + $0x30] sm:$0xff]
    %v873 = vld [vmem:[#allocation2 + $0x38] sm:$0xff]
    %v874 = vld [vmem:[#allocation2 + $0x40] sm:$0xff]
    %v875 = vld [vmem:[#allocation2 + $0x48] sm:$0xff]
    %v876 = vld [vmem:[#allocation2 + $0x50] sm:$0xff]
    %v877 = vld [vmem:[#allocation2 + $0x58] sm:$0xff]
    %v878 = vld [vmem:[#allocation2 + $0x60] sm:$0xff]
    %v879 = vld [vmem:[#allocation2 + $0x68] sm:$0xff]
    %v880 = vld [vmem:[#allocation2 + $0x70] sm:$0xff]
    %v881 = vld [vmem:[#allocation2 + $0x78] sm:$0xff]
    %v882 = vld [vmem:[#allocation2 + $0x80] sm:$0xff]
    %v883 = vld [vmem:[#allocation2 + $0x88] sm:$0xff]
    %v884 = vld [vmem:[#allocation2 + $0x90] sm:$0xff]
    %v885 = vld [vmem:[#allocation2 + $0x98] sm:$0xff]
    %v886 = vld [vmem:[#allocation2 + $0xa0] sm:$0xff]
    %v887 = vld [vmem:[#allocation2 + $0xa8] sm:$0xff]
    %v888 = vld [vmem:[#allocation2 + $0xb0] sm:$0xff]
    %v889 = vld [vmem:[#allocation2 + $0xb8] sm:$0xff]
    %v890 = vld [vmem:[#allocation2 + $0xc0] sm:$0xff]
    %v891 = vld [vmem:[#allocation2 + $0xc8] sm:$0xff]
    %v892 = vld [vmem:[#allocation2 + $0xd0] sm:$0xff]
    %v893 = vld [vmem:[#allocation2 + $0xd8] sm:$0xff]
    %v894 = vld [vmem:[#allocation2 + $0xe0] sm:$0xff]
    %v895 = vld [vmem:[#allocation2 + $0xe8] sm:$0xff]
    %v896 = vld [vmem:[#allocation2 + $0xf0] sm:$0xff]
    %v897 = vld [vmem:[#allocation2 + $0xf8] sm:$0xff]
    %v898 = vadd.f32 %v834, %v866
    %v899 = vadd.f32 %v835, %v867
    %v900 = vadd.f32 %v836, %v868
    %v901 = vadd.f32 %v837, %v869
    %v902 = vadd.f32 %v838, %v870
    %v903 = vadd.f32 %v839, %v871
    %v904 = vadd.f32 %v840, %v872
    %v905 = vadd.f32 %v841, %v873
    %v906 = vadd.f32 %v842, %v874
    %v907 = vadd.f32 %v843, %v875
    %v908 = vadd.f32 %v844, %v876
    %v909 = vadd.f32 %v845, %v877
    %v910 = vadd.f32 %v846, %v878
    %v911 = vadd.f32 %v847, %v879
    %v912 = vadd.f32 %v848, %v880
    %v913 = vadd.f32 %v849, %v881
    %v914 = vadd.f32 %v850, %v882
    %v915 = vadd.f32 %v851, %v883
    %v916 = vadd.f32 %v852, %v884
    %v917 = vadd.f32 %v853, %v885
    %v918 = vadd.f32 %v854, %v886
    %v919 = vadd.f32 %v855, %v887
    %v920 = vadd.f32 %v856, %v888
    %v921 = vadd.f32 %v857, %v889
    %v922 = vadd.f32 %v858, %v890
    %v923 = vadd.f32 %v859, %v891
    %v924 = vadd.f32 %v860, %v892
    %v925 = vadd.f32 %v861, %v893
    %v926 = vadd.f32 %v862, %v894
    %v927 = vadd.f32 %v863, %v895
    %v928 = vadd.f32 %v864, %v896
    %v929 = vadd.f32 %v865, %v897
    %930 = vst [vmem:[%s4] sm:$0xff] %v898
    %931 = vst [vmem:[%s4 + $0x8] sm:$0xff] %v899
    %932 = vst [vmem:[%s4 + $0x10] sm:$0xff] %v900
    %933 = vst [vmem:[%s4 + $0x18] sm:$0xff] %v901
    %934 = vst [vmem:[%s4 + $0x20] sm:$0xff] %v902
    %935 = vst [vmem:[%s4 + $0x28] sm:$0xff] %v903
    %936 = vst [vmem:[%s4 + $0x30] sm:$0xff] %v904
    %937 = vst [vmem:[%s4 + $0x38] sm:$0xff] %v905
    %938 = vst [vmem:[%s4 + $0x40] sm:$0xff] %v906
    %939 = vst [vmem:[%s4 + $0x48] sm:$0xff] %v907
    %940 = vst [vmem:[%s4 + $0x50] sm:$0xff] %v908
    %941 = vst [vmem:[%s4 + $0x58] sm:$0xff] %v909
    %942 = vst [vmem:[%s4 + $0x60] sm:$0xff] %v910
    %943 = vst [vmem:[%s4 + $0x68] sm:$0xff] %v911
    %944 = vst [vmem:[%s4 + $0x70] sm:$0xff] %v912
    %945 = vst [vmem:[%s4 + $0x78] sm:$0xff] %v913
    %946 = vst [vmem:[%s4 + $0x80] sm:$0xff] %v914
    %947 = vst [vmem:[%s4 + $0x88] sm:$0xff] %v915
    %948 = vst [vmem:[%s4 + $0x90] sm:$0xff] %v916
    %949 = vst [vmem:[%s4 + $0x98] sm:$0xff] %v917
    %950 = vst [vmem:[%s4 + $0xa0] sm:$0xff] %v918
    %951 = vst [vmem:[%s4 + $0xa8] sm:$0xff] %v919
    %952 = vst [vmem:[%s4 + $0xb0] sm:$0xff] %v920
    %953 = vst [vmem:[%s4 + $0xb8] sm:$0xff] %v921
    %954 = vst [vmem:[%s4 + $0xc0] sm:$0xff] %v922
    %955 = vst [vmem:[%s4 + $0xc8] sm:$0xff] %v923
    %956 = vst [vmem:[%s4 + $0xd0] sm:$0xff] %v924
    %957 = vst [vmem:[%s4 + $0xd8] sm:$0xff] %v925
    %958 = vst [vmem:[%s4 + $0xe0] sm:$0xff] %v926
    %959 = vst [vmem:[%s4 + $0xe8] sm:$0xff] %v927
    %960 = vst [vmem:[%s4 + $0xf0] sm:$0xff] %v928
    %961 = vst [vmem:[%s4 + $0xf8] sm:$0xff] %v929
  $region25: #{lightgcn_forward.3} parent=0 // pred_fallthru
    _
  // Predicated region
  $region26: #{lightgcn_forward.3} parent=0 // pred_check
    _
  $region27: #{lightgcn_forward.3} parent=0 // pred_check_branch
    %963 = sbr.rel (0) target = $region29
  $region28: #{lightgcn_forward.3} parent=0 // pred_region
    _
  $region29: #{lightgcn_forward.3} parent=0 // pred_fallthru
    _
  // Predicated region
  $region30: #{lightgcn_forward.3} parent=0 // pred_check
    _
  $region31: #{lightgcn_forward.3} parent=0 // pred_check_branch
    %965 = sbr.rel (0) target = $region33
  $region32: #{lightgcn_forward.3} parent=0 // pred_region
    _
  $region33: #{lightgcn_forward.3} parent=0 // pred_fallthru
    _
  // Predicated region
  $region34: #{lightgcn_forward.3} parent=0 // pred_check
    _
  $region35: #{lightgcn_forward.3} parent=0 // pred_check_branch
    %967 = sbr.rel (0) target = $region37
  $region36: #{lightgcn_forward.3} parent=0 // pred_region
    _
  $region37: #{lightgcn_forward.3} parent=0 // pred_fallthru
    _
  // Predicated region
  $region38: #{lightgcn_forward.3} parent=0 // pred_check
    _
  $region39: #{lightgcn_forward.3} parent=0 // pred_check_branch
    %969 = sbr.rel (0) target = $region41
  $region40: #{lightgcn_forward.3} parent=0 // pred_region
    _
  $region41: #{lightgcn_forward.3} parent=0 // pred_fallthru
    _

</llo_original>
